<compile_context>
chip_gen: v7x
topology: tpu7x:2x2x1
jax: 0.10.0
libtpu: 0.0.40
codegen_flags: <defaults>
</compile_context>

<pallas_src>
import functools

import jax
import jax.numpy as jnp
from jax import lax
from jax.experimental import pallas as pl
from jax.experimental.pallas import tpu as pltpu


def lstm_head_kernel(x2d_ref, hc0_ref, w_ih_ref, w_hh_ref, w_head_ref, pvec_ref,
                     out_ref, hcT_ref,
                     *, seq_len, batch_pad, hidden_size, obs_dim, eps):
    """Single-layer LSTM over the whole sequence + deferred Linear+LN+tanh head."""
    T, Bp, H = seq_len, batch_pad, hidden_size
    G = 4 * H

    # Recurrent weights loaded once and kept live across the loop.
    w_hh = w_hh_ref[...]                                     # (H, 4H)
    # TODO(synk): pltpu.matmul_push_rhs/acc_lhs/pop could pin w_hh in the MXU
    # weight registers across all T steps; left to Mosaic's staged-RHS hoist
    # here (verify in the bundle dump before hand-driving the MXU).

    # Fused 1-row parameters, sliced once outside the recurrence.
    b      = pvec_ref[0:1, :G]                               # (1, 4H), order (i,f,o,g)
    b_head = pvec_ref[1:2, :obs_dim]                         # (1, obs_dim)
    gamma  = pvec_ref[2:3, :obs_dim]
    beta   = pvec_ref[3:4, :obs_dim]

    # (2) Input projection for every timestep in one matmul, bias folded in;
    #     kept as a value (registers), no VMEM scratch round trip.
    xw = jnp.dot(x2d_ref[...], w_ih_ref[...],
                 preferred_element_type=jnp.float32) + b     # (T*Bp, 4H)

    h = hc0_ref[0:Bp, :]                                     # (Bp, H)
    c = hc0_ref[Bp:2 * Bp, :]                                # (Bp, H)

    h_all = []
    for t in range(T):                                       # static unroll
        # Only the recurrent matmul remains on the serial critical path;
        # the xw slice is a static, sublane-tile-aligned vreg view.
        gates = xw[t * Bp:(t + 1) * Bp, :] + jnp.dot(
            h, w_hh, preferred_element_type=jnp.float32)     # (Bp, 4H)
        # Gate order (i, f, o, g): one wide sigmoid + one tanh per step.
        sig = jax.nn.sigmoid(gates[:, :3 * H])
        g_g = jnp.tanh(gates[:, 3 * H:])
        i_g = sig[:, 0 * H:1 * H]
        f_g = sig[:, 1 * H:2 * H]
        o_g = sig[:, 2 * H:3 * H]
        c = f_g * c + i_g * g_g
        h = o_g * jnp.tanh(c)
        h_all.append(h)

    # Final recurrent state, single fused store.
    hcT_ref[...] = jnp.concatenate([h, c], axis=0)           # (2Bp, H)

    # (5) Deferred head: one batched matmul + vectorized LayerNorm + tanh,
    #     single bulk store of the whole (T*Bp, obs_dim) slab.
    hall = jnp.concatenate(h_all, axis=0)                    # (T*Bp, H)
    y = jnp.dot(hall, w_head_ref[...],
                preferred_element_type=jnp.float32) + b_head # (T*Bp, obs_dim)
    mu = jnp.mean(y, axis=-1, keepdims=True)
    var = jnp.mean((y - mu) ** 2, axis=-1, keepdims=True)
    y = (y - mu) * lax.rsqrt(var + eps) * gamma + beta
    out_ref[...] = jnp.tanh(y)


def multistep_forward_dynamics_lstm(x, hs, target_shape, params, hidden_size=32):
    """Pallas-backed forward pass of MultiStepForwardDynamicsLSTM.

    x: (B, T, obs_dim + act_dim) float32, batch_first.
    hs: (h0, c0), each (1, B, hidden_size).
    params: PyTorch-layout weights, pre-transposed to right-multiply, gate
      order (i, f, g, o), combined bias b = b_ih + b_hh.
    Returns (out.reshape(target_shape), (h_T, c_T)).
    """
    h0, c0 = hs
    B, T, D_in = x.shape
    H = hidden_size
    G = 4 * H
    obs_dim = params["w_head"].shape[1]
    Bp = ((B + 7) // 8) * 8                     # pad batch to the sublane tile
    W = max(G, obs_dim)                         # fused 1-row param width

    def reorder(w):
        # PyTorch gate order (i, f, g, o) -> (i, f, o, g) so the three sigmoid
        # gates are lane-contiguous inside the kernel.
        i = w[..., 0 * H:1 * H]
        f = w[..., 1 * H:2 * H]
        g = w[..., 2 * H:3 * H]
        o = w[..., 3 * H:4 * H]
        return jnp.concatenate([i, f, o, g], axis=-1)

    w_ih = reorder(params["w_ih"])
    w_hh = reorder(params["w_hh"])
    b = reorder(params["b"])

    def pad_row(v):
        return jnp.pad(v, ((0, 0), (0, W - v.shape[1])))

    # Fused 1-row parameters: row 0 = b, 1 = b_head, 2 = gamma, 3 = beta.
    pvec = jnp.concatenate([pad_row(b), pad_row(params["b_head"]),
                            pad_row(params["gamma"]), pad_row(params["beta"])],
                           axis=0)                                   # (4, W)

    # Time-major slab, batch padded to Bp, flattened (row = t*Bp + b).
    x_tm = jnp.transpose(x, (1, 0, 2))                               # (T, B, D_in)
    x_tm = jnp.pad(x_tm, ((0, 0), (0, Bp - B), (0, 0)))
    x2d = x_tm.reshape(T * Bp, D_in)

    hc0 = jnp.concatenate([jnp.pad(h0[0], ((0, Bp - B), (0, 0))),
                           jnp.pad(c0[0], ((0, Bp - B), (0, 0)))], axis=0)  # (2Bp, H)

    kernel = functools.partial(lstm_head_kernel, seq_len=T, batch_pad=Bp,
                               hidden_size=H, obs_dim=obs_dim, eps=1e-5)

    def full(shape):
        n = len(shape)
        return pl.BlockSpec(shape, lambda i, _n=n: (0,) * _n)

    out2d, hcT = pl.pallas_call(
        kernel,
        out_shape=(
            jax.ShapeDtypeStruct((T * Bp, obs_dim), jnp.float32),
            jax.ShapeDtypeStruct((2 * Bp, H), jnp.float32),
        ),
        grid=(1,),
        in_specs=[
            full((T * Bp, D_in)),        # x2d
            full((2 * Bp, H)),           # hc0 (h0 ; c0)
            full((D_in, G)),             # w_ih
            full((H, G)),                # w_hh
            full((H, obs_dim)),          # w_head
            full((4, W)),                # fused 1-row params
        ],
        out_specs=(full((T * Bp, obs_dim)), full((2 * Bp, H))),
        compiler_params=pltpu.CompilerParams(
            dimension_semantics=("arbitrary",)),
    )(x2d, hc0, w_ih, w_hh, params["w_head"], pvec)

    out = (out2d.reshape(T, Bp, obs_dim)[:, :B, :]
           .transpose(1, 0, 2).reshape(target_shape))
    hT = hcT[0:B]
    cT = hcT[Bp:Bp + B]
    return out, (hT[None], cT[None])


def reference_forward(x, hs, target_shape, params, hidden_size=32):
    """Pure-JAX reference replicating PyTorch nn.LSTM + head semantics."""
    h, c = hs[0][0], hs[1][0]
    H = hidden_size
    B, T, _ = x.shape
    outs = []
    for t in range(T):
        gates = x[:, t, :] @ params["w_ih"] + h @ params["w_hh"] + params["b"]
        i = jax.nn.sigmoid(gates[:, 0 * H:1 * H])
        f = jax.nn.sigmoid(gates[:, 1 * H:2 * H])
        g = jnp.tanh(gates[:, 2 * H:3 * H])
        o = jax.nn.sigmoid(gates[:, 3 * H:4 * H])
        c = f * c + i * g
        h = o * jnp.tanh(c)
        outs.append(h)
    out = jnp.stack(outs, axis=1).reshape(-1, H)          # (B*T, H)
    y = out @ params["w_head"] + params["b_head"]
    mu = jnp.mean(y, axis=-1, keepdims=True)
    var = jnp.mean((y - mu) ** 2, axis=-1, keepdims=True)
    y = (y - mu) / jnp.sqrt(var + 1e-5) * params["gamma"] + params["beta"]
    y = jnp.tanh(y).reshape(target_shape)
    return y, (h[None], c[None])


if __name__ == "__main__":
    # Small shapes implied by the module's forward.
    B, T = 2, 8
    obs_dim, act_dim = 10, 6
    H = 32
    D_in = obs_dim + act_dim

    key = jax.random.PRNGKey(0)
    ks = jax.random.split(key, 12)

    # Deterministic synthetic parameters (PyTorch LSTM gate order i,f,g,o;
    # biases b_ih + b_hh folded into a single bias).
    params = {
        "w_ih":   0.1 * jax.random.normal(ks[0], (D_in, 4 * H), jnp.float32),
        "w_hh":   0.1 * jax.random.normal(ks[1], (H, 4 * H), jnp.float32),
        "b":      0.1 * jax.random.normal(ks[2], (1, 4 * H), jnp.float32),
        "w_head": 0.1 * jax.random.normal(ks[3], (H, obs_dim), jnp.float32),
        "b_head": 0.1 * jax.random.normal(ks[4], (1, obs_dim), jnp.float32),
        "gamma":  jnp.ones((1, obs_dim), jnp.float32),
        "beta":   jnp.zeros((1, obs_dim), jnp.float32),
    }

    x = jax.random.normal(ks[5], (B, T, D_in), jnp.float32)
    h0 = jax.random.normal(ks[6], (1, B, H), jnp.float32)
    c0 = jax.random.normal(ks[7], (1, B, H), jnp.float32)
    target_shape = (B, T, obs_dim)

    out, (hT, cT) = multistep_forward_dynamics_lstm(
        x, (h0, c0), target_shape, params, hidden_size=H)
    jax.block_until_ready((out, hT, cT))

    out_ref, (hT_ref, cT_ref) = reference_forward(
        x, (h0, c0), target_shape, params, hidden_size=H)

    assert out.shape == target_shape and hT.shape == (1, B, H) and cT.shape == (1, B, H)
    assert jnp.allclose(out, out_ref, atol=1e-5, rtol=1e-5)
    assert jnp.allclose(hT, hT_ref, atol=1e-5, rtol=1e-5)
    assert jnp.allclose(cT, cT_ref, atol=1e-5, rtol=1e-5)

    print("KERNEL_OK")
</pallas_src>

<mosaic_0001>
module attributes {stable_mosaic.version = 11 : i64} {
  func.func @lstm_head_kernel(%arg0: i32, %arg1: memref<64x16xf32, #tpu.memory_space<vmem>>, %arg2: memref<16x32xf32, #tpu.memory_space<vmem>>, %arg3: memref<16x128xf32, #tpu.memory_space<vmem>>, %arg4: memref<32x128xf32, #tpu.memory_space<vmem>>, %arg5: memref<32x10xf32, #tpu.memory_space<vmem>>, %arg6: memref<4x128xf32, #tpu.memory_space<vmem>>, %arg7: memref<64x10xf32, #tpu.memory_space<vmem>>, %arg8: memref<16x32xf32, #tpu.memory_space<vmem>>) attributes {dimension_semantics = [#tpu.dimension_semantics<arbitrary>], iteration_bounds = array<i64: 1>, scalar_prefetch = 0 : i64, scratch_operands = 0 : i64, tpu.core_type = #tpu.core_type<tc>, window_params = [{pipeline_mode = #tpu.pipeline_mode<synchronous>, transform_indices = @transform_0, window_bounds = array<i64: 64, 16>}, {pipeline_mode = #tpu.pipeline_mode<synchronous>, transform_indices = @transform_1, window_bounds = array<i64: 16, 32>}, {pipeline_mode = #tpu.pipeline_mode<synchronous>, transform_indices = @transform_2, window_bounds = array<i64: 16, 128>}, {pipeline_mode = #tpu.pipeline_mode<synchronous>, transform_indices = @transform_3, window_bounds = array<i64: 32, 128>}, {pipeline_mode = #tpu.pipeline_mode<synchronous>, transform_indices = @transform_4, window_bounds = array<i64: 32, 10>}, {pipeline_mode = #tpu.pipeline_mode<synchronous>, transform_indices = @transform_5, window_bounds = array<i64: 4, 128>}, {pipeline_mode = #tpu.pipeline_mode<synchronous>, transform_indices = @transform_6, window_bounds = array<i64: 64, 10>}, {pipeline_mode = #tpu.pipeline_mode<synchronous>, transform_indices = @transform_7, window_bounds = array<i64: 16, 32>}]} {
    %c0 = arith.constant 0 : index
    %c0_0 = arith.constant 0 : index
    %0 = vector.load %arg4[%c0, %c0_0] : memref<32x128xf32, #tpu.memory_space<vmem>>, vector<32x128xf32>
    %c0_1 = arith.constant 0 : index
    %c0_2 = arith.constant 0 : index
    %1 = vector.load %arg6[%c0_1, %c0_2] : memref<4x128xf32, #tpu.memory_space<vmem>>, vector<1x128xf32>
    %c1 = arith.constant 1 : index
    %c0_3 = arith.constant 0 : index
    %2 = vector.load %arg6[%c1, %c0_3] : memref<4x128xf32, #tpu.memory_space<vmem>>, vector<1x10xf32>
    %c2 = arith.constant 2 : index
    %c0_4 = arith.constant 0 : index
    %3 = vector.load %arg6[%c2, %c0_4] : memref<4x128xf32, #tpu.memory_space<vmem>>, vector<1x10xf32>
    %c3 = arith.constant 3 : index
    %c0_5 = arith.constant 0 : index
    %4 = vector.load %arg6[%c3, %c0_5] : memref<4x128xf32, #tpu.memory_space<vmem>>, vector<1x10xf32>
    %c0_6 = arith.constant 0 : index
    %c0_7 = arith.constant 0 : index
    %5 = vector.load %arg1[%c0_6, %c0_7] : memref<64x16xf32, #tpu.memory_space<vmem>>, vector<64x16xf32>
    %c0_8 = arith.constant 0 : index
    %c0_9 = arith.constant 0 : index
    %6 = vector.load %arg3[%c0_8, %c0_9] : memref<16x128xf32, #tpu.memory_space<vmem>>, vector<16x128xf32>
    %cst = arith.constant dense<0.000000e+00> : vector<64x128xf32>
    %7 = tpu.matmul %5, %6, %cst {dimension_numbers = #tpu.dot_dimension_numbers<[1], [0], [0], [1], [0, 0, 1, 1], [], []>} : vector<64x16xf32>, vector<16x128xf32>, vector<64x128xf32> -> vector<64x128xf32>
    %8 = vector.broadcast %1 : vector<1x128xf32> to vector<64x128xf32>
    %9 = arith.addf %7, %8 : vector<64x128xf32>
    %c0_10 = arith.constant 0 : index
    %c0_11 = arith.constant 0 : index
    %10 = vector.load %arg2[%c0_10, %c0_11] : memref<16x32xf32, #tpu.memory_space<vmem>>, vector<8x32xf32>
    %c8 = arith.constant 8 : index
    %c0_12 = arith.constant 0 : index
    %11 = vector.load %arg2[%c8, %c0_12] : memref<16x32xf32, #tpu.memory_space<vmem>>, vector<8x32xf32>
    %12 = vector.extract_strided_slice %9 {offsets = [0, 0], sizes = [8, 128], strides = [1, 1]} : vector<64x128xf32> to vector<8x128xf32>
    %cst_13 = arith.constant dense<0.000000e+00> : vector<8x128xf32>
    %13 = tpu.matmul %10, %0, %cst_13 {dimension_numbers = #tpu.dot_dimension_numbers<[1], [0], [0], [1], [0, 0, 1, 1], [], []>} : vector<8x32xf32>, vector<32x128xf32>, vector<8x128xf32> -> vector<8x128xf32>
    %14 = arith.addf %12, %13 : vector<8x128xf32>
    %15 = vector.extract_strided_slice %14 {offsets = [0, 0], sizes = [8, 96], strides = [1, 1]} : vector<8x128xf32> to vector<8x96xf32>
    %16 = arith.negf %15 : vector<8x96xf32>
    %17 = math.exp %16 : vector<8x96xf32>
    %cst_14 = arith.constant 1.000000e+00 : f32
    %18 = vector.broadcast %cst_14 : f32 to vector<8x96xf32>
    %19 = arith.addf %18, %17 : vector<8x96xf32>
    %20 = arith.divf %18, %19 : vector<8x96xf32>
    %21 = vector.extract_strided_slice %14 {offsets = [0, 96], sizes = [8, 32], strides = [1, 1]} : vector<8x128xf32> to vector<8x32xf32>
    %22 = math.tanh %21 : vector<8x32xf32>
    %23 = vector.extract_strided_slice %20 {offsets = [0, 0], sizes = [8, 32], strides = [1, 1]} : vector<8x96xf32> to vector<8x32xf32>
    %24 = vector.extract_strided_slice %20 {offsets = [0, 32], sizes = [8, 32], strides = [1, 1]} : vector<8x96xf32> to vector<8x32xf32>
    %25 = vector.extract_strided_slice %20 {offsets = [0, 64], sizes = [8, 32], strides = [1, 1]} : vector<8x96xf32> to vector<8x32xf32>
    %26 = arith.mulf %24, %11 : vector<8x32xf32>
    %27 = arith.mulf %23, %22 : vector<8x32xf32>
    %28 = arith.addf %26, %27 : vector<8x32xf32>
    %29 = math.tanh %28 : vector<8x32xf32>
    %30 = arith.mulf %25, %29 : vector<8x32xf32>
    %31 = vector.extract_strided_slice %9 {offsets = [8, 0], sizes = [8, 128], strides = [1, 1]} : vector<64x128xf32> to vector<8x128xf32>
    %cst_15 = arith.constant dense<0.000000e+00> : vector<8x128xf32>
    %32 = tpu.matmul %30, %0, %cst_15 {dimension_numbers = #tpu.dot_dimension_numbers<[1], [0], [0], [1], [0, 0, 1, 1], [], []>} : vector<8x32xf32>, vector<32x128xf32>, vector<8x128xf32> -> vector<8x128xf32>
    %33 = arith.addf %31, %32 : vector<8x128xf32>
    %34 = vector.extract_strided_slice %33 {offsets = [0, 0], sizes = [8, 96], strides = [1, 1]} : vector<8x128xf32> to vector<8x96xf32>
    %35 = arith.negf %34 : vector<8x96xf32>
    %36 = math.exp %35 : vector<8x96xf32>
    %cst_16 = arith.constant 1.000000e+00 : f32
    %37 = vector.broadcast %cst_16 : f32 to vector<8x96xf32>
    %38 = arith.addf %37, %36 : vector<8x96xf32>
    %39 = arith.divf %37, %38 : vector<8x96xf32>
    %40 = vector.extract_strided_slice %33 {offsets = [0, 96], sizes = [8, 32], strides = [1, 1]} : vector<8x128xf32> to vector<8x32xf32>
    %41 = math.tanh %40 : vector<8x32xf32>
    %42 = vector.extract_strided_slice %39 {offsets = [0, 0], sizes = [8, 32], strides = [1, 1]} : vector<8x96xf32> to vector<8x32xf32>
    %43 = vector.extract_strided_slice %39 {offsets = [0, 32], sizes = [8, 32], strides = [1, 1]} : vector<8x96xf32> to vector<8x32xf32>
    %44 = vector.extract_strided_slice %39 {offsets = [0, 64], sizes = [8, 32], strides = [1, 1]} : vector<8x96xf32> to vector<8x32xf32>
    %45 = arith.mulf %43, %28 : vector<8x32xf32>
    %46 = arith.mulf %42, %41 : vector<8x32xf32>
    %47 = arith.addf %45, %46 : vector<8x32xf32>
    %48 = math.tanh %47 : vector<8x32xf32>
    %49 = arith.mulf %44, %48 : vector<8x32xf32>
    %50 = vector.extract_strided_slice %9 {offsets = [16, 0], sizes = [8, 128], strides = [1, 1]} : vector<64x128xf32> to vector<8x128xf32>
    %cst_17 = arith.constant dense<0.000000e+00> : vector<8x128xf32>
    %51 = tpu.matmul %49, %0, %cst_17 {dimension_numbers = #tpu.dot_dimension_numbers<[1], [0], [0], [1], [0, 0, 1, 1], [], []>} : vector<8x32xf32>, vector<32x128xf32>, vector<8x128xf32> -> vector<8x128xf32>
    %52 = arith.addf %50, %51 : vector<8x128xf32>
    %53 = vector.extract_strided_slice %52 {offsets = [0, 0], sizes = [8, 96], strides = [1, 1]} : vector<8x128xf32> to vector<8x96xf32>
    %54 = arith.negf %53 : vector<8x96xf32>
    %55 = math.exp %54 : vector<8x96xf32>
    %cst_18 = arith.constant 1.000000e+00 : f32
    %56 = vector.broadcast %cst_18 : f32 to vector<8x96xf32>
    %57 = arith.addf %56, %55 : vector<8x96xf32>
    %58 = arith.divf %56, %57 : vector<8x96xf32>
    %59 = vector.extract_strided_slice %52 {offsets = [0, 96], sizes = [8, 32], strides = [1, 1]} : vector<8x128xf32> to vector<8x32xf32>
    %60 = math.tanh %59 : vector<8x32xf32>
    %61 = vector.extract_strided_slice %58 {offsets = [0, 0], sizes = [8, 32], strides = [1, 1]} : vector<8x96xf32> to vector<8x32xf32>
    %62 = vector.extract_strided_slice %58 {offsets = [0, 32], sizes = [8, 32], strides = [1, 1]} : vector<8x96xf32> to vector<8x32xf32>
    %63 = vector.extract_strided_slice %58 {offsets = [0, 64], sizes = [8, 32], strides = [1, 1]} : vector<8x96xf32> to vector<8x32xf32>
    %64 = arith.mulf %62, %47 : vector<8x32xf32>
    %65 = arith.mulf %61, %60 : vector<8x32xf32>
    %66 = arith.addf %64, %65 : vector<8x32xf32>
    %67 = math.tanh %66 : vector<8x32xf32>
    %68 = arith.mulf %63, %67 : vector<8x32xf32>
    %69 = vector.extract_strided_slice %9 {offsets = [24, 0], sizes = [8, 128], strides = [1, 1]} : vector<64x128xf32> to vector<8x128xf32>
    %cst_19 = arith.constant dense<0.000000e+00> : vector<8x128xf32>
    %70 = tpu.matmul %68, %0, %cst_19 {dimension_numbers = #tpu.dot_dimension_numbers<[1], [0], [0], [1], [0, 0, 1, 1], [], []>} : vector<8x32xf32>, vector<32x128xf32>, vector<8x128xf32> -> vector<8x128xf32>
    %71 = arith.addf %69, %70 : vector<8x128xf32>
    %72 = vector.extract_strided_slice %71 {offsets = [0, 0], sizes = [8, 96], strides = [1, 1]} : vector<8x128xf32> to vector<8x96xf32>
    %73 = arith.negf %72 : vector<8x96xf32>
    %74 = math.exp %73 : vector<8x96xf32>
    %cst_20 = arith.constant 1.000000e+00 : f32
    %75 = vector.broadcast %cst_20 : f32 to vector<8x96xf32>
    %76 = arith.addf %75, %74 : vector<8x96xf32>
    %77 = arith.divf %75, %76 : vector<8x96xf32>
    %78 = vector.extract_strided_slice %71 {offsets = [0, 96], sizes = [8, 32], strides = [1, 1]} : vector<8x128xf32> to vector<8x32xf32>
    %79 = math.tanh %78 : vector<8x32xf32>
    %80 = vector.extract_strided_slice %77 {offsets = [0, 0], sizes = [8, 32], strides = [1, 1]} : vector<8x96xf32> to vector<8x32xf32>
    %81 = vector.extract_strided_slice %77 {offsets = [0, 32], sizes = [8, 32], strides = [1, 1]} : vector<8x96xf32> to vector<8x32xf32>
    %82 = vector.extract_strided_slice %77 {offsets = [0, 64], sizes = [8, 32], strides = [1, 1]} : vector<8x96xf32> to vector<8x32xf32>
    %83 = arith.mulf %81, %66 : vector<8x32xf32>
    %84 = arith.mulf %80, %79 : vector<8x32xf32>
    %85 = arith.addf %83, %84 : vector<8x32xf32>
    %86 = math.tanh %85 : vector<8x32xf32>
    %87 = arith.mulf %82, %86 : vector<8x32xf32>
    %88 = vector.extract_strided_slice %9 {offsets = [32, 0], sizes = [8, 128], strides = [1, 1]} : vector<64x128xf32> to vector<8x128xf32>
    %cst_21 = arith.constant dense<0.000000e+00> : vector<8x128xf32>
    %89 = tpu.matmul %87, %0, %cst_21 {dimension_numbers = #tpu.dot_dimension_numbers<[1], [0], [0], [1], [0, 0, 1, 1], [], []>} : vector<8x32xf32>, vector<32x128xf32>, vector<8x128xf32> -> vector<8x128xf32>
    %90 = arith.addf %88, %89 : vector<8x128xf32>
    %91 = vector.extract_strided_slice %90 {offsets = [0, 0], sizes = [8, 96], strides = [1, 1]} : vector<8x128xf32> to vector<8x96xf32>
    %92 = arith.negf %91 : vector<8x96xf32>
    %93 = math.exp %92 : vector<8x96xf32>
    %cst_22 = arith.constant 1.000000e+00 : f32
    %94 = vector.broadcast %cst_22 : f32 to vector<8x96xf32>
    %95 = arith.addf %94, %93 : vector<8x96xf32>
    %96 = arith.divf %94, %95 : vector<8x96xf32>
    %97 = vector.extract_strided_slice %90 {offsets = [0, 96], sizes = [8, 32], strides = [1, 1]} : vector<8x128xf32> to vector<8x32xf32>
    %98 = math.tanh %97 : vector<8x32xf32>
    %99 = vector.extract_strided_slice %96 {offsets = [0, 0], sizes = [8, 32], strides = [1, 1]} : vector<8x96xf32> to vector<8x32xf32>
    %100 = vector.extract_strided_slice %96 {offsets = [0, 32], sizes = [8, 32], strides = [1, 1]} : vector<8x96xf32> to vector<8x32xf32>
    %101 = vector.extract_strided_slice %96 {offsets = [0, 64], sizes = [8, 32], strides = [1, 1]} : vector<8x96xf32> to vector<8x32xf32>
    %102 = arith.mulf %100, %85 : vector<8x32xf32>
    %103 = arith.mulf %99, %98 : vector<8x32xf32>
    %104 = arith.addf %102, %103 : vector<8x32xf32>
    %105 = math.tanh %104 : vector<8x32xf32>
    %106 = arith.mulf %101, %105 : vector<8x32xf32>
    %107 = vector.extract_strided_slice %9 {offsets = [40, 0], sizes = [8, 128], strides = [1, 1]} : vector<64x128xf32> to vector<8x128xf32>
    %cst_23 = arith.constant dense<0.000000e+00> : vector<8x128xf32>
    %108 = tpu.matmul %106, %0, %cst_23 {dimension_numbers = #tpu.dot_dimension_numbers<[1], [0], [0], [1], [0, 0, 1, 1], [], []>} : vector<8x32xf32>, vector<32x128xf32>, vector<8x128xf32> -> vector<8x128xf32>
    %109 = arith.addf %107, %108 : vector<8x128xf32>
    %110 = vector.extract_strided_slice %109 {offsets = [0, 0], sizes = [8, 96], strides = [1, 1]} : vector<8x128xf32> to vector<8x96xf32>
    %111 = arith.negf %110 : vector<8x96xf32>
    %112 = math.exp %111 : vector<8x96xf32>
    %cst_24 = arith.constant 1.000000e+00 : f32
    %113 = vector.broadcast %cst_24 : f32 to vector<8x96xf32>
    %114 = arith.addf %113, %112 : vector<8x96xf32>
    %115 = arith.divf %113, %114 : vector<8x96xf32>
    %116 = vector.extract_strided_slice %109 {offsets = [0, 96], sizes = [8, 32], strides = [1, 1]} : vector<8x128xf32> to vector<8x32xf32>
    %117 = math.tanh %116 : vector<8x32xf32>
    %118 = vector.extract_strided_slice %115 {offsets = [0, 0], sizes = [8, 32], strides = [1, 1]} : vector<8x96xf32> to vector<8x32xf32>
    %119 = vector.extract_strided_slice %115 {offsets = [0, 32], sizes = [8, 32], strides = [1, 1]} : vector<8x96xf32> to vector<8x32xf32>
    %120 = vector.extract_strided_slice %115 {offsets = [0, 64], sizes = [8, 32], strides = [1, 1]} : vector<8x96xf32> to vector<8x32xf32>
    %121 = arith.mulf %119, %104 : vector<8x32xf32>
    %122 = arith.mulf %118, %117 : vector<8x32xf32>
    %123 = arith.addf %121, %122 : vector<8x32xf32>
    %124 = math.tanh %123 : vector<8x32xf32>
    %125 = arith.mulf %120, %124 : vector<8x32xf32>
    %126 = vector.extract_strided_slice %9 {offsets = [48, 0], sizes = [8, 128], strides = [1, 1]} : vector<64x128xf32> to vector<8x128xf32>
    %cst_25 = arith.constant dense<0.000000e+00> : vector<8x128xf32>
    %127 = tpu.matmul %125, %0, %cst_25 {dimension_numbers = #tpu.dot_dimension_numbers<[1], [0], [0], [1], [0, 0, 1, 1], [], []>} : vector<8x32xf32>, vector<32x128xf32>, vector<8x128xf32> -> vector<8x128xf32>
    %128 = arith.addf %126, %127 : vector<8x128xf32>
    %129 = vector.extract_strided_slice %128 {offsets = [0, 0], sizes = [8, 96], strides = [1, 1]} : vector<8x128xf32> to vector<8x96xf32>
    %130 = arith.negf %129 : vector<8x96xf32>
    %131 = math.exp %130 : vector<8x96xf32>
    %cst_26 = arith.constant 1.000000e+00 : f32
    %132 = vector.broadcast %cst_26 : f32 to vector<8x96xf32>
    %133 = arith.addf %132, %131 : vector<8x96xf32>
    %134 = arith.divf %132, %133 : vector<8x96xf32>
    %135 = vector.extract_strided_slice %128 {offsets = [0, 96], sizes = [8, 32], strides = [1, 1]} : vector<8x128xf32> to vector<8x32xf32>
    %136 = math.tanh %135 : vector<8x32xf32>
    %137 = vector.extract_strided_slice %134 {offsets = [0, 0], sizes = [8, 32], strides = [1, 1]} : vector<8x96xf32> to vector<8x32xf32>
    %138 = vector.extract_strided_slice %134 {offsets = [0, 32], sizes = [8, 32], strides = [1, 1]} : vector<8x96xf32> to vector<8x32xf32>
    %139 = vector.extract_strided_slice %134 {offsets = [0, 64], sizes = [8, 32], strides = [1, 1]} : vector<8x96xf32> to vector<8x32xf32>
    %140 = arith.mulf %138, %123 : vector<8x32xf32>
    %141 = arith.mulf %137, %136 : vector<8x32xf32>
    %142 = arith.addf %140, %141 : vector<8x32xf32>
    %143 = math.tanh %142 : vector<8x32xf32>
    %144 = arith.mulf %139, %143 : vector<8x32xf32>
    %145 = vector.extract_strided_slice %9 {offsets = [56, 0], sizes = [8, 128], strides = [1, 1]} : vector<64x128xf32> to vector<8x128xf32>
    %cst_27 = arith.constant dense<0.000000e+00> : vector<8x128xf32>
    %146 = tpu.matmul %144, %0, %cst_27 {dimension_numbers = #tpu.dot_dimension_numbers<[1], [0], [0], [1], [0, 0, 1, 1], [], []>} : vector<8x32xf32>, vector<32x128xf32>, vector<8x128xf32> -> vector<8x128xf32>
    %147 = arith.addf %145, %146 : vector<8x128xf32>
    %148 = vector.extract_strided_slice %147 {offsets = [0, 0], sizes = [8, 96], strides = [1, 1]} : vector<8x128xf32> to vector<8x96xf32>
    %149 = arith.negf %148 : vector<8x96xf32>
    %150 = math.exp %149 : vector<8x96xf32>
    %cst_28 = arith.constant 1.000000e+00 : f32
    %151 = vector.broadcast %cst_28 : f32 to vector<8x96xf32>
    %152 = arith.addf %151, %150 : vector<8x96xf32>
    %153 = arith.divf %151, %152 : vector<8x96xf32>
    %154 = vector.extract_strided_slice %147 {offsets = [0, 96], sizes = [8, 32], strides = [1, 1]} : vector<8x128xf32> to vector<8x32xf32>
    %155 = math.tanh %154 : vector<8x32xf32>
    %156 = vector.extract_strided_slice %153 {offsets = [0, 0], sizes = [8, 32], strides = [1, 1]} : vector<8x96xf32> to vector<8x32xf32>
    %157 = vector.extract_strided_slice %153 {offsets = [0, 32], sizes = [8, 32], strides = [1, 1]} : vector<8x96xf32> to vector<8x32xf32>
    %158 = vector.extract_strided_slice %153 {offsets = [0, 64], sizes = [8, 32], strides = [1, 1]} : vector<8x96xf32> to vector<8x32xf32>
    %159 = arith.mulf %157, %142 : vector<8x32xf32>
    %160 = arith.mulf %156, %155 : vector<8x32xf32>
    %161 = arith.addf %159, %160 : vector<8x32xf32>
    %162 = math.tanh %161 : vector<8x32xf32>
    %163 = arith.mulf %158, %162 : vector<8x32xf32>
    %164 = tpu.concatenate %163, %161 in 0 : vector<8x32xf32>, vector<8x32xf32> -> vector<16x32xf32>
    %c0_29 = arith.constant 0 : index
    %c0_30 = arith.constant 0 : index
    %165 = vector.load %arg8[%c0_29, %c0_30] : memref<16x32xf32, #tpu.memory_space<vmem>>, vector<16x32xf32>
    tpu.vector_store %arg8[%c0_29, %c0_30], %164 {strides = array<i32>} : memref<16x32xf32, #tpu.memory_space<vmem>>, vector<16x32xf32>,
    %166 = tpu.concatenate %30, %49, %68, %87, %106, %125, %144, %163 in 0 : vector<8x32xf32>, vector<8x32xf32>, vector<8x32xf32>, vector<8x32xf32>, vector<8x32xf32>, vector<8x32xf32>, vector<8x32xf32>, vector<8x32xf32> -> vector<64x32xf32>
    %c0_31 = arith.constant 0 : index
    %c0_32 = arith.constant 0 : index
    %167 = vector.load %arg5[%c0_31, %c0_32] : memref<32x10xf32, #tpu.memory_space<vmem>>, vector<32x10xf32>
    %cst_33 = arith.constant dense<0.000000e+00> : vector<64x10xf32>
    %168 = tpu.matmul %166, %167, %cst_33 {dimension_numbers = #tpu.dot_dimension_numbers<[1], [0], [0], [1], [0, 0, 1, 1], [], []>} : vector<64x32xf32>, vector<32x10xf32>, vector<64x10xf32> -> vector<64x10xf32>
    %169 = vector.broadcast %2 : vector<1x10xf32> to vector<64x10xf32>
    %170 = arith.addf %168, %169 : vector<64x10xf32>
    %cst_34 = arith.constant dense<0.000000e+00> : vector<64xf32>
    %171 = vector.multi_reduction <add>, %170, %cst_34 [1] : vector<64x10xf32> to vector<64xf32>
    %172 = vector.shape_cast %171 : vector<64xf32> to vector<64x1xf32>
    %cst_35 = arith.constant 1.000000e+01 : f32
    %173 = vector.broadcast %cst_35 : f32 to vector<64x1xf32>
    %174 = arith.divf %172, %173 : vector<64x1xf32>
    %175 = vector.broadcast %174 : vector<64x1xf32> to vector<64x10xf32>
    %176 = arith.subf %170, %175 : vector<64x10xf32>
    %177 = arith.mulf %176, %176 : vector<64x10xf32>
    %cst_36 = arith.constant dense<0.000000e+00> : vector<64xf32>
    %178 = vector.multi_reduction <add>, %177, %cst_36 [1] : vector<64x10xf32> to vector<64xf32>
    %179 = vector.shape_cast %178 : vector<64xf32> to vector<64x1xf32>
    %cst_37 = arith.constant 1.000000e+01 : f32
    %180 = vector.broadcast %cst_37 : f32 to vector<64x1xf32>
    %181 = arith.divf %179, %180 : vector<64x1xf32>
    %182 = vector.broadcast %174 : vector<64x1xf32> to vector<64x10xf32>
    %183 = arith.subf %170, %182 : vector<64x10xf32>
    %cst_38 = arith.constant 9.99999974E-6 : f32
    %184 = vector.broadcast %cst_38 : f32 to vector<64x1xf32>
    %185 = arith.addf %181, %184 : vector<64x1xf32>
    %186 = math.rsqrt %185 : vector<64x1xf32>
    %187 = vector.broadcast %186 : vector<64x1xf32> to vector<64x10xf32>
    %188 = arith.mulf %183, %187 : vector<64x10xf32>
    %189 = vector.broadcast %3 : vector<1x10xf32> to vector<64x10xf32>
    %190 = arith.mulf %188, %189 : vector<64x10xf32>
    %191 = vector.broadcast %4 : vector<1x10xf32> to vector<64x10xf32>
    %192 = arith.addf %190, %191 : vector<64x10xf32>
    %193 = math.tanh %192 : vector<64x10xf32>
    %c0_39 = arith.constant 0 : index
    %c0_40 = arith.constant 0 : index
    %194 = vector.load %arg7[%c0_39, %c0_40] : memref<64x10xf32, #tpu.memory_space<vmem>>, vector<64x10xf32>
    tpu.vector_store %arg7[%c0_39, %c0_40], %193 {strides = array<i32>} : memref<64x10xf32, #tpu.memory_space<vmem>>, vector<64x10xf32>,
    return
  }
  func.func @transform_0(%arg0: i32) -> (i32, i32) {
    %c0_i32 = arith.constant 0 : i32
    %c0_i32_0 = arith.constant 0 : i32
    %c0_i32_1 = arith.constant 0 : i32
    return %c0_i32, %c0_i32_0 : i32, i32
  }
  func.func @transform_1(%arg0: i32) -> (i32, i32) {
    %c0_i32 = arith.constant 0 : i32
    %c0_i32_0 = arith.constant 0 : i32
    %c0_i32_1 = arith.constant 0 : i32
    return %c0_i32, %c0_i32_0 : i32, i32
  }
  func.func @transform_2(%arg0: i32) -> (i32, i32) {
    %c0_i32 = arith.constant 0 : i32
    %c0_i32_0 = arith.constant 0 : i32
    %c0_i32_1 = arith.constant 0 : i32
    return %c0_i32, %c0_i32_0 : i32, i32
  }
  func.func @transform_3(%arg0: i32) -> (i32, i32) {
    %c0_i32 = arith.constant 0 : i32
    %c0_i32_0 = arith.constant 0 : i32
    %c0_i32_1 = arith.constant 0 : i32
    return %c0_i32, %c0_i32_0 : i32, i32
  }
  func.func @transform_4(%arg0: i32) -> (i32, i32) {
    %c0_i32 = arith.constant 0 : i32
    %c0_i32_0 = arith.constant 0 : i32
    %c0_i32_1 = arith.constant 0 : i32
    return %c0_i32, %c0_i32_0 : i32, i32
  }
  func.func @transform_5(%arg0: i32) -> (i32, i32) {
    %c0_i32 = arith.constant 0 : i32
    %c0_i32_0 = arith.constant 0 : i32
    %c0_i32_1 = arith.constant 0 : i32
    return %c0_i32, %c0_i32_0 : i32, i32
  }
  func.func @transform_6(%arg0: i32) -> (i32, i32) {
    %c0_i32 = arith.constant 0 : i32
    %c0_i32_0 = arith.constant 0 : i32
    %c0_i32_1 = arith.constant 0 : i32
    return %c0_i32, %c0_i32_0 : i32, i32
  }
  func.func @transform_7(%arg0: i32) -> (i32, i32) {
    %c0_i32 = arith.constant 0 : i32
    %c0_i32_0 = arith.constant 0 : i32
    %c0_i32_1 = arith.constant 0 : i32
    return %c0_i32, %c0_i32_0 : i32, i32
  }
}

</mosaic_0001>

<llo_original>
// kernel: tpu_custom_call.1
$region0: #{tpu_custom_call.1}
  #allocation0 [shape = 'u32[]', space=smem, size = 0x4, offset = 0x4, fixed_abs, tag = 'smem constant byte address 0x4 - core index']
  #allocation1 [shape = 'u32[144,128]{1,0:T(1,128)}', space=vmem, size = 0x12000, scoped, tag = 'internal scratch']
  %s0 = inlined_call_operand.vmem [shape: f32[64,16], index: 0, kind: input, shape index: {}]
  %s1 = inlined_call_operand.vmem [shape: f32[16,32], index: 1, kind: input, shape index: {}]
  %s2 = inlined_call_operand.vmem [shape: f32[16,128], index: 2, kind: input, shape index: {}]
  %s3 = inlined_call_operand.vmem [shape: f32[32,128], index: 3, kind: input, shape index: {}]
  %s4 = inlined_call_operand.vmem [shape: f32[32,10], index: 4, kind: input, shape index: {}]
  %s5 = inlined_call_operand.vmem [shape: f32[4,128], index: 5, kind: input, shape index: {}]
  %s6 = inlined_call_operand.vmem [shape: f32[64,10], index: 6, kind: output, shape index: {0}]
  %s7 = inlined_call_operand.hbm [shape: f32[16,32], index: 7, kind: output, shape index: {1}]
  %8 = xla_tuple %s6, %s7
  %s9 = sld [smem:[#allocation0]]
  $region42: #{tpu_custom_call.1} parent=0
    _
  %s11 = ssub.s32 1, %s9
  %s12 = scalar_select 0, %s11, %s9
  $region1: #{tpu_custom_call.1} parent=0
    #allocation2 [shape = 'u8[8192]{0}', space=vmem, size = 0x2000, scoped, tag = 'output window, operand 1, single buffered']
    #allocation3 [shape = 's32[1]{0}', space=sflag, size = 0x4, scoped, tag = 'scoped memory for tpu_custom_call.1']
    %13 = vsyncpa [#allocation3], 0
    // Predicated region
    $region2: #{tpu_custom_call.1} parent=1 // pred_check
      _
    $region3: #{tpu_custom_call.1} parent=1 // pred_check_branch
      %15 = sbr.rel (0) target = $region5
    $region4: #{tpu_custom_call.1} parent=1 // pred_region
      _
    $region5: #{tpu_custom_call.1} parent=1 // pred_fallthru
      _
    // Predicated region
    $region6: #{tpu_custom_call.1} parent=1 // pred_check
      _
    $region7: #{tpu_custom_call.1} parent=1 // pred_check_branch
      %17 = sbr.rel (0) target = $region9
    $region8: #{tpu_custom_call.1} parent=1 // pred_region
      _
    $region9: #{tpu_custom_call.1} parent=1 // pred_fallthru
      _
    // Predicated region
    $region10: #{tpu_custom_call.1} parent=1 // pred_check
      _
    $region11: #{tpu_custom_call.1} parent=1 // pred_check_branch
      %19 = sbr.rel (0) target = $region13
    $region12: #{tpu_custom_call.1} parent=1 // pred_region
      _
    $region13: #{tpu_custom_call.1} parent=1 // pred_fallthru
      _
    // Predicated region
    $region14: #{tpu_custom_call.1} parent=1 // pred_check
      _
    $region15: #{tpu_custom_call.1} parent=1 // pred_check_branch
      %21 = sbr.rel (0) target = $region17
    $region16: #{tpu_custom_call.1} parent=1 // pred_region
      _
    $region17: #{tpu_custom_call.1} parent=1 // pred_fallthru
      _
    // Predicated region
    $region18: #{tpu_custom_call.1} parent=1 // pred_check
      _
    $region19: #{tpu_custom_call.1} parent=1 // pred_check_branch
      %23 = sbr.rel (0) target = $region21
    $region20: #{tpu_custom_call.1} parent=1 // pred_region
      _
    $region21: #{tpu_custom_call.1} parent=1 // pred_fallthru
      _
    // Predicated region
    $region22: #{tpu_custom_call.1} parent=1 // pred_check
      _
    $region23: #{tpu_custom_call.1} parent=1 // pred_check_branch
      %25 = sbr.rel (0) target = $region25
    $region24: #{tpu_custom_call.1} parent=1 // pred_region
      _
    $region25: #{tpu_custom_call.1} parent=1 // pred_fallthru
      _
    %v26 = vld [vmem:[%s3] sm:$0xff]
    %v27 = vld [vmem:[%s3 + $0x8] sm:$0xff]
    %v28 = vld [vmem:[%s3 + $0x10] sm:$0xff]
    %v29 = vld [vmem:[%s3 + $0x18] sm:$0xff]
    %v30 = vld [vmem:[%s5] sm:$0x1]
    %v31 = vld [vmem:[%s5 + $0x1] sm:$0x1]
    %v32 = vld [vmem:[%s5 + $0x2] sm:$0x1]
    %v33 = vld [vmem:[%s5 + $0x3] sm:$0x1]
    %v34 = vld [vmem:[%s0] sm:$0xff]
    %v35 = vld [vmem:[%s0 + $0x8] sm:$0xff]
    %v36 = vld [vmem:[%s0 + $0x10] sm:$0xff]
    %v37 = vld [vmem:[%s0 + $0x18] sm:$0xff]
    %v38 = vld [vmem:[%s0 + $0x20] sm:$0xff]
    %v39 = vld [vmem:[%s0 + $0x28] sm:$0xff]
    %v40 = vld [vmem:[%s0 + $0x30] sm:$0xff]
    %v41 = vld [vmem:[%s0 + $0x38] sm:$0xff]
    %v42 = vld [vmem:[%s2] sm:$0xff]
    %v43 = vld [vmem:[%s2 + $0x8] sm:$0xff]
    %v44 = vlaneseq
    %v45 = vshrl.u32 %v44, 7
    %v46 = vsub.s32 0, %v45
    %v47 = vrot.slane %v30, %v46
    %vm48 = vcmask 130048
    %v50 = vsel %vm48, %v34, 0
    %v53 = vsel %vm48, %v35, 0
    %v56 = vsel %vm48, %v36, 0
    %v59 = vsel %vm48, %v37, 0
    %v62 = vsel %vm48, %v38, 0
    %v65 = vsel %vm48, %v39, 0
    %v68 = vsel %vm48, %v40, 0
    %v71 = vsel %vm48, %v41, 0
    %73 = vmatprep.subr.mxu0 0.0
    %74 = vmatpush1.msra.mxu0 %v42
    %75 = vmatprep.subr.mxu0 0.0
    %76 = vmatpush1.msra.mxu0 %v43
    %77 = vmatprep.subr.mxu0 0.0
    %78 = vmatpush1.msra.mxu0 0.0
    %79 = vmatprep.subr.mxu0 0.0
    %80 = vmatpush1.msra.mxu0 0.0
    %81 = vmatprep.subr.mxu0 0.0
    %82 = vmatpush1.msra.mxu0 0.0
    %83 = vmatprep.subr.mxu0 0.0
    %84 = vmatpush1.msra.mxu0 0.0
    %85 = vmatprep.subr.mxu0 0.0
    %86 = vmatpush1.msra.mxu0 0.0
    %87 = vmatprep.subr.mxu0 0.0
    %88 = vmatpush1.msra.mxu0 0.0
    %89 = vmatprep.subr.mxu0 0.0
    %90 = vmatpush1.msra.mxu0 0.0
    %91 = vmatprep.subr.mxu0 0.0
    %92 = vmatpush1.msra.mxu0 0.0
    %93 = vmatprep.subr.mxu0 0.0
    %94 = vmatpush1.msra.mxu0 0.0
    %95 = vmatprep.subr.mxu0 0.0
    %96 = vmatpush1.msra.mxu0 0.0
    %97 = vmatprep.subr.mxu0 0.0
    %98 = vmatpush1.msra.mxu0 0.0
    %99 = vmatprep.subr.mxu0 0.0
    %100 = vmatpush1.msra.mxu0 0.0
    %101 = vmatprep.subr.mxu0 0.0
    %102 = vmatpush1.msra.mxu0 0.0
    %103 = vmatprep.subr.mxu0 0.0
    %104 = vmatpush1.msra.mxu0 0.0
    %105 = vmatprep.subr.mxu0 0.0
    %106 = vmatpush1.msra.mxu0 0.0
    %107 = vmatprep.subr.mxu0 0.0
    %108 = vmatpush1.msra.mxu0 0.0
    %109 = vmatprep.subr.mxu0 0.0
    %110 = vmatpush1.msra.mxu0 0.0
    %111 = vmatprep.subr.mxu0 0.0
    %112 = vmatpush1.msra.mxu0 0.0
    %113 = vmatprep.subr.mxu0 0.0
    %114 = vmatpush1.msra.mxu0 0.0
    %115 = vmatprep.subr.mxu0 0.0
    %116 = vmatpush1.msra.mxu0 0.0
    %117 = vmatprep.subr.mxu0 0.0
    %118 = vmatpush1.msra.mxu0 0.0
    %119 = vmatprep.subr.mxu0 0.0
    %120 = vmatpush1.msra.mxu0 0.0
    %121 = vmatprep.subr.mxu0 0.0
    %122 = vmatpush1.msra.mxu0 0.0
    %123 = vmatprep.subr.mxu0 0.0
    %124 = vmatpush1.msra.mxu0 0.0
    %125 = vmatprep.subr.mxu0 0.0
    %126 = vmatpush1.msra.mxu0 0.0
    %127 = vmatprep.subr.mxu0 0.0
    %128 = vmatpush1.msra.mxu0 0.0
    %129 = vmatprep.subr.mxu0 0.0
    %130 = vmatpush1.msra.mxu0 0.0
    %131 = vmatprep.subr.mxu0 0.0
    %132 = vmatpush1.msra.mxu0 0.0
    %133 = vmatprep.subr.mxu0 0.0
    %134 = vmatpush1.msra.mxu0 0.0
    %135 = vmatprep.subr.mxu0 0.0
    %136 = vmatpush1.msra.mxu0 0.0
    %137 = vmatprep.mubr.f32.mxu0 0.0
    %138 = vmatmul.mubr.f32.gmra.mrb[0].mxu0 %v50
    %v139 = vpop.f32.mrb[0].mxu0
    %v140 = vadd.f32 %v47, %v139
    %v141 = vpop.f32.mrb[0].mxu0
    %142 = vmatprep.mubr.f32.mxu0 0.0
    %143 = vmatmul.mubr.f32.gmra.mrb[0].mxu0 %v53
    %v144 = vpop.f32.mrb[0].mxu0
    %v145 = vadd.f32 %v47, %v144
    %v146 = vpop.f32.mrb[0].mxu0
    %147 = vmatprep.mubr.f32.mxu0 0.0
    %148 = vmatmul.mubr.f32.gmra.mrb[0].mxu0 %v56
    %v149 = vpop.f32.mrb[0].mxu0
    %v150 = vadd.f32 %v47, %v149
    %v151 = vpop.f32.mrb[0].mxu0
    %152 = vmatprep.mubr.f32.mxu0 0.0
    %153 = vmatmul.mubr.f32.gmra.mrb[0].mxu0 %v59
    %v154 = vpop.f32.mrb[0].mxu0
    %v155 = vadd.f32 %v47, %v154
    %v156 = vpop.f32.mrb[0].mxu0
    %157 = vmatprep.mubr.f32.mxu0 0.0
    %158 = vmatmul.mubr.f32.gmra.mrb[0].mxu0 %v62
    %v159 = vpop.f32.mrb[0].mxu0
    %v160 = vadd.f32 %v47, %v159
    %v161 = vpop.f32.mrb[0].mxu0
    %162 = vmatprep.mubr.f32.mxu0 0.0
    %163 = vmatmul.mubr.f32.gmra.mrb[0].mxu0 %v65
    %v164 = vpop.f32.mrb[0].mxu0
    %v165 = vadd.f32 %v47, %v164
    %v166 = vpop.f32.mrb[0].mxu0
    %167 = vmatprep.mubr.f32.mxu0 0.0
    %168 = vmatmul.mubr.f32.gmra.mrb[0].mxu0 %v68
    %v169 = vpop.f32.mrb[0].mxu0
    %v170 = vadd.f32 %v47, %v169
    %v171 = vpop.f32.mrb[0].mxu0
    %172 = vmatprep.mubr.f32.mxu0 0.0
    %173 = vmatmul.mubr.f32.gmra.mrb[0].mxu0 %v71
    %v174 = vpop.f32.mrb[0].mxu0
    %v175 = vadd.f32 %v47, %v174
    %v176 = vpop.f32.mrb[0].mxu0
    %177 = vdwg.mxu0
    %v178 = vld [vmem:[%s1] sm:$0xff]
    %v179 = vld [vmem:[%s1 + $0x8] sm:$0xff]
    %vm180 = vcmask 261120
    %v182 = vsel %vm180, %v178, 0
    %184 = vmatprep.subr.mxu0 0.0
    %185 = vmatpush1.msra.mxu0 %v26
    %186 = vmatprep.subr.mxu0 0.0
    %187 = vmatpush1.msra.mxu0 %v27
    %188 = vmatprep.subr.mxu0 0.0
    %189 = vmatpush1.msra.mxu0 %v28
    %190 = vmatprep.subr.mxu0 0.0
    %191 = vmatpush1.msra.mxu0 %v29
    %192 = vmatprep.subr.mxu0 0.0
    %193 = vmatpush1.msra.mxu0 0.0
    %194 = vmatprep.subr.mxu0 0.0
    %195 = vmatpush1.msra.mxu0 0.0
    %196 = vmatprep.subr.mxu0 0.0
    %197 = vmatpush1.msra.mxu0 0.0
    %198 = vmatprep.subr.mxu0 0.0
    %199 = vmatpush1.msra.mxu0 0.0
    %200 = vmatprep.subr.mxu0 0.0
    %201 = vmatpush1.msra.mxu0 0.0
    %202 = vmatprep.subr.mxu0 0.0
    %203 = vmatpush1.msra.mxu0 0.0
    %204 = vmatprep.subr.mxu0 0.0
    %205 = vmatpush1.msra.mxu0 0.0
    %206 = vmatprep.subr.mxu0 0.0
    %207 = vmatpush1.msra.mxu0 0.0
    %208 = vmatprep.subr.mxu0 0.0
    %209 = vmatpush1.msra.mxu0 0.0
    %210 = vmatprep.subr.mxu0 0.0
    %211 = vmatpush1.msra.mxu0 0.0
    %212 = vmatprep.subr.mxu0 0.0
    %213 = vmatpush1.msra.mxu0 0.0
    %214 = vmatprep.subr.mxu0 0.0
    %215 = vmatpush1.msra.mxu0 0.0
    %216 = vmatprep.subr.mxu0 0.0
    %217 = vmatpush1.msra.mxu0 0.0
    %218 = vmatprep.subr.mxu0 0.0
    %219 = vmatpush1.msra.mxu0 0.0
    %220 = vmatprep.subr.mxu0 0.0
    %221 = vmatpush1.msra.mxu0 0.0
    %222 = vmatprep.subr.mxu0 0.0
    %223 = vmatpush1.msra.mxu0 0.0
    %224 = vmatprep.subr.mxu0 0.0
    %225 = vmatpush1.msra.mxu0 0.0
    %226 = vmatprep.subr.mxu0 0.0
    %227 = vmatpush1.msra.mxu0 0.0
    %228 = vmatprep.subr.mxu0 0.0
    %229 = vmatpush1.msra.mxu0 0.0
    %230 = vmatprep.subr.mxu0 0.0
    %231 = vmatpush1.msra.mxu0 0.0
    %232 = vmatprep.subr.mxu0 0.0
    %233 = vmatpush1.msra.mxu0 0.0
    %234 = vmatprep.subr.mxu0 0.0
    %235 = vmatpush1.msra.mxu0 0.0
    %236 = vmatprep.subr.mxu0 0.0
    %237 = vmatpush1.msra.mxu0 0.0
    %238 = vmatprep.subr.mxu0 0.0
    %239 = vmatpush1.msra.mxu0 0.0
    %240 = vmatprep.subr.mxu0 0.0
    %241 = vmatpush1.msra.mxu0 0.0
    %242 = vmatprep.subr.mxu0 0.0
    %243 = vmatpush1.msra.mxu0 0.0
    %244 = vmatprep.subr.mxu0 0.0
    %245 = vmatpush1.msra.mxu0 0.0
    %246 = vmatprep.subr.mxu0 0.0
    %247 = vmatpush1.msra.mxu0 0.0
    %248 = vmatprep.mubr.f32.mxu0 0.0
    %249 = vmatmul.mubr.f32.gmra.mrb[0].mxu0 %v182
    %v250 = vpop.f32.mrb[0].mxu0
    %v251 = vadd.f32 0.0, %v250
    %v252 = vpop.f32.mrb[0].mxu0
    %253 = vdwg.mxu0
    %v254 = vadd.f32 %v140, %v251
    %v255 = vxor.u32 %v254, 2147483648
    %v256 = vmul.f32 %v255, 1.442695
    %v257 = vpow.pop %v256
    %v258 = vadd.f32 %v257, 1.0
    %v259 = vrcp.pop %v258
    %v260 = vmul.f32 1.0, %v259
    %v261 = vtanh.pop %v254
    %263 = vrot.lane.b32.xlu0 %v179, 32
    %v264 = vpop.permute.xlu0 %263
    %v266 = vmul.f32 %v260, %v264
    %268 = vrot.lane.b32.xlu0 %v261, 32
    %v269 = vpop.permute.xlu0 %268
    %v271 = vmul.f32 %v260, %v269
    %273 = vrot.lane.b32.xlu0 %v271, 32
    %v274 = vpop.permute.xlu0 %273
    %v276 = vadd.f32 %v266, %v274
    %v277 = vtanh.pop %v276
    %279 = vrot.lane.b32.xlu0 %v277, 32
    %v280 = vpop.permute.xlu0 %279
    %v282 = vmul.f32 %v260, %v280
    %284 = vrot.lane.b32.xlu0 %v282, 64
    %v285 = vpop.permute.xlu0 %284
    %v286 = vsel %vm180, %v285, 0
    %288 = vmatprep.subr.mxu0 0.0
    %289 = vmatpush1.msra.mxu0 %v26
    %290 = vmatprep.subr.mxu0 0.0
    %291 = vmatpush1.msra.mxu0 %v27
    %292 = vmatprep.subr.mxu0 0.0
    %293 = vmatpush1.msra.mxu0 %v28
    %294 = vmatprep.subr.mxu0 0.0
    %295 = vmatpush1.msra.mxu0 %v29
    %296 = vmatprep.subr.mxu0 0.0
    %297 = vmatpush1.msra.mxu0 0.0
    %298 = vmatprep.subr.mxu0 0.0
    %299 = vmatpush1.msra.mxu0 0.0
    %300 = vmatprep.subr.mxu0 0.0
    %301 = vmatpush1.msra.mxu0 0.0
    %302 = vmatprep.subr.mxu0 0.0
    %303 = vmatpush1.msra.mxu0 0.0
    %304 = vmatprep.subr.mxu0 0.0
    %305 = vmatpush1.msra.mxu0 0.0
    %306 = vmatprep.subr.mxu0 0.0
    %307 = vmatpush1.msra.mxu0 0.0
    %308 = vmatprep.subr.mxu0 0.0
    %309 = vmatpush1.msra.mxu0 0.0
    %310 = vmatprep.subr.mxu0 0.0
    %311 = vmatpush1.msra.mxu0 0.0
    %312 = vmatprep.subr.mxu0 0.0
    %313 = vmatpush1.msra.mxu0 0.0
    %314 = vmatprep.subr.mxu0 0.0
    %315 = vmatpush1.msra.mxu0 0.0
    %316 = vmatprep.subr.mxu0 0.0
    %317 = vmatpush1.msra.mxu0 0.0
    %318 = vmatprep.subr.mxu0 0.0
    %319 = vmatpush1.msra.mxu0 0.0
    %320 = vmatprep.subr.mxu0 0.0
    %321 = vmatpush1.msra.mxu0 0.0
    %322 = vmatprep.subr.mxu0 0.0
    %323 = vmatpush1.msra.mxu0 0.0
    %324 = vmatprep.subr.mxu0 0.0
    %325 = vmatpush1.msra.mxu0 0.0
    %326 = vmatprep.subr.mxu0 0.0
    %327 = vmatpush1.msra.mxu0 0.0
    %328 = vmatprep.subr.mxu0 0.0
    %329 = vmatpush1.msra.mxu0 0.0
    %330 = vmatprep.subr.mxu0 0.0
    %331 = vmatpush1.msra.mxu0 0.0
    %332 = vmatprep.subr.mxu0 0.0
    %333 = vmatpush1.msra.mxu0 0.0
    %334 = vmatprep.subr.mxu0 0.0
    %335 = vmatpush1.msra.mxu0 0.0
    %336 = vmatprep.subr.mxu0 0.0
    %337 = vmatpush1.msra.mxu0 0.0
    %338 = vmatprep.subr.mxu0 0.0
    %339 = vmatpush1.msra.mxu0 0.0
    %340 = vmatprep.subr.mxu0 0.0
    %341 = vmatpush1.msra.mxu0 0.0
    %342 = vmatprep.subr.mxu0 0.0
    %343 = vmatpush1.msra.mxu0 0.0
    %344 = vmatprep.subr.mxu0 0.0
    %345 = vmatpush1.msra.mxu0 0.0
    %346 = vmatprep.subr.mxu0 0.0
    %347 = vmatpush1.msra.mxu0 0.0
    %348 = vmatprep.subr.mxu0 0.0
    %349 = vmatpush1.msra.mxu0 0.0
    %350 = vmatprep.subr.mxu0 0.0
    %351 = vmatpush1.msra.mxu0 0.0
    %352 = vmatprep.mubr.f32.mxu0 0.0
    %353 = vmatmul.mubr.f32.gmra.mrb[0].mxu0 %v286
    %v354 = vpop.f32.mrb[0].mxu0
    %v355 = vadd.f32 0.0, %v354
    %v356 = vpop.f32.mrb[0].mxu0
    %357 = vdwg.mxu0
    %v358 = vadd.f32 %v145, %v355
    %v359 = vxor.u32 %v358, 2147483648
    %v360 = vmul.f32 %v359, 1.442695
    %v361 = vpow.pop %v360
    %v362 = vadd.f32 %v361, 1.0
    %v363 = vrcp.pop %v362
    %v364 = vmul.f32 1.0, %v363
    %v365 = vtanh.pop %v358
    %v366 = vmul.f32 %v364, %v276
    %368 = vrot.lane.b32.xlu0 %v365, 32
    %v369 = vpop.permute.xlu0 %368
    %v371 = vmul.f32 %v364, %v369
    %373 = vrot.lane.b32.xlu0 %v371, 32
    %v374 = vpop.permute.xlu0 %373
    %v376 = vadd.f32 %v366, %v374
    %v377 = vtanh.pop %v376
    %379 = vrot.lane.b32.xlu0 %v377, 32
    %v380 = vpop.permute.xlu0 %379
    %v382 = vmul.f32 %v364, %v380
    %384 = vrot.lane.b32.xlu0 %v382, 64
    %v385 = vpop.permute.xlu0 %384
    %v386 = vsel %vm180, %v385, 0
    %388 = vmatprep.subr.mxu0 0.0
    %389 = vmatpush1.msra.mxu0 %v26
    %390 = vmatprep.subr.mxu0 0.0
    %391 = vmatpush1.msra.mxu0 %v27
    %392 = vmatprep.subr.mxu0 0.0
    %393 = vmatpush1.msra.mxu0 %v28
    %394 = vmatprep.subr.mxu0 0.0
    %395 = vmatpush1.msra.mxu0 %v29
    %396 = vmatprep.subr.mxu0 0.0
    %397 = vmatpush1.msra.mxu0 0.0
    %398 = vmatprep.subr.mxu0 0.0
    %399 = vmatpush1.msra.mxu0 0.0
    %400 = vmatprep.subr.mxu0 0.0
    %401 = vmatpush1.msra.mxu0 0.0
    %402 = vmatprep.subr.mxu0 0.0
    %403 = vmatpush1.msra.mxu0 0.0
    %404 = vmatprep.subr.mxu0 0.0
    %405 = vmatpush1.msra.mxu0 0.0
    %406 = vmatprep.subr.mxu0 0.0
    %407 = vmatpush1.msra.mxu0 0.0
    %408 = vmatprep.subr.mxu0 0.0
    %409 = vmatpush1.msra.mxu0 0.0
    %410 = vmatprep.subr.mxu0 0.0
    %411 = vmatpush1.msra.mxu0 0.0
    %412 = vmatprep.subr.mxu0 0.0
    %413 = vmatpush1.msra.mxu0 0.0
    %414 = vmatprep.subr.mxu0 0.0
    %415 = vmatpush1.msra.mxu0 0.0
    %416 = vmatprep.subr.mxu0 0.0
    %417 = vmatpush1.msra.mxu0 0.0
    %418 = vmatprep.subr.mxu0 0.0
    %419 = vmatpush1.msra.mxu0 0.0
    %420 = vmatprep.subr.mxu0 0.0
    %421 = vmatpush1.msra.mxu0 0.0
    %422 = vmatprep.subr.mxu0 0.0
    %423 = vmatpush1.msra.mxu0 0.0
    %424 = vmatprep.subr.mxu0 0.0
    %425 = vmatpush1.msra.mxu0 0.0
    %426 = vmatprep.subr.mxu0 0.0
    %427 = vmatpush1.msra.mxu0 0.0
    %428 = vmatprep.subr.mxu0 0.0
    %429 = vmatpush1.msra.mxu0 0.0
    %430 = vmatprep.subr.mxu0 0.0
    %431 = vmatpush1.msra.mxu0 0.0
    %432 = vmatprep.subr.mxu0 0.0
    %433 = vmatpush1.msra.mxu0 0.0
    %434 = vmatprep.subr.mxu0 0.0
    %435 = vmatpush1.msra.mxu0 0.0
    %436 = vmatprep.subr.mxu0 0.0
    %437 = vmatpush1.msra.mxu0 0.0
    %438 = vmatprep.subr.mxu0 0.0
    %439 = vmatpush1.msra.mxu0 0.0
    %440 = vmatprep.subr.mxu0 0.0
    %441 = vmatpush1.msra.mxu0 0.0
    %442 = vmatprep.subr.mxu0 0.0
    %443 = vmatpush1.msra.mxu0 0.0
    %444 = vmatprep.subr.mxu0 0.0
    %445 = vmatpush1.msra.mxu0 0.0
    %446 = vmatprep.subr.mxu0 0.0
    %447 = vmatpush1.msra.mxu0 0.0
    %448 = vmatprep.subr.mxu0 0.0
    %449 = vmatpush1.msra.mxu0 0.0
    %450 = vmatprep.subr.mxu0 0.0
    %451 = vmatpush1.msra.mxu0 0.0
    %452 = vmatprep.mubr.f32.mxu0 0.0
    %453 = vmatmul.mubr.f32.gmra.mrb[0].mxu0 %v386
    %v454 = vpop.f32.mrb[0].mxu0
    %v455 = vadd.f32 0.0, %v454
    %v456 = vpop.f32.mrb[0].mxu0
    %457 = vdwg.mxu0
    %v458 = vadd.f32 %v150, %v455
    %v459 = vxor.u32 %v458, 2147483648
    %v460 = vmul.f32 %v459, 1.442695
    %v461 = vpow.pop %v460
    %v462 = vadd.f32 %v461, 1.0
    %v463 = vrcp.pop %v462
    %v464 = vmul.f32 1.0, %v463
    %v465 = vtanh.pop %v458
    %v466 = vmul.f32 %v464, %v376
    %468 = vrot.lane.b32.xlu0 %v465, 32
    %v469 = vpop.permute.xlu0 %468
    %v471 = vmul.f32 %v464, %v469
    %473 = vrot.lane.b32.xlu0 %v471, 32
    %v474 = vpop.permute.xlu0 %473
    %v476 = vadd.f32 %v466, %v474
    %v477 = vtanh.pop %v476
    %479 = vrot.lane.b32.xlu0 %v477, 32
    %v480 = vpop.permute.xlu0 %479
    %v482 = vmul.f32 %v464, %v480
    %484 = vrot.lane.b32.xlu0 %v482, 64
    %v485 = vpop.permute.xlu0 %484
    %v486 = vsel %vm180, %v485, 0
    %488 = vmatprep.subr.mxu0 0.0
    %489 = vmatpush1.msra.mxu0 %v26
    %490 = vmatprep.subr.mxu0 0.0
    %491 = vmatpush1.msra.mxu0 %v27
    %492 = vmatprep.subr.mxu0 0.0
    %493 = vmatpush1.msra.mxu0 %v28
    %494 = vmatprep.subr.mxu0 0.0
    %495 = vmatpush1.msra.mxu0 %v29
    %496 = vmatprep.subr.mxu0 0.0
    %497 = vmatpush1.msra.mxu0 0.0
    %498 = vmatprep.subr.mxu0 0.0
    %499 = vmatpush1.msra.mxu0 0.0
    %500 = vmatprep.subr.mxu0 0.0
    %501 = vmatpush1.msra.mxu0 0.0
    %502 = vmatprep.subr.mxu0 0.0
    %503 = vmatpush1.msra.mxu0 0.0
    %504 = vmatprep.subr.mxu0 0.0
    %505 = vmatpush1.msra.mxu0 0.0
    %506 = vmatprep.subr.mxu0 0.0
    %507 = vmatpush1.msra.mxu0 0.0
    %508 = vmatprep.subr.mxu0 0.0
    %509 = vmatpush1.msra.mxu0 0.0
    %510 = vmatprep.subr.mxu0 0.0
    %511 = vmatpush1.msra.mxu0 0.0
    %512 = vmatprep.subr.mxu0 0.0
    %513 = vmatpush1.msra.mxu0 0.0
    %514 = vmatprep.subr.mxu0 0.0
    %515 = vmatpush1.msra.mxu0 0.0
    %516 = vmatprep.subr.mxu0 0.0
    %517 = vmatpush1.msra.mxu0 0.0
    %518 = vmatprep.subr.mxu0 0.0
    %519 = vmatpush1.msra.mxu0 0.0
    %520 = vmatprep.subr.mxu0 0.0
    %521 = vmatpush1.msra.mxu0 0.0
    %522 = vmatprep.subr.mxu0 0.0
    %523 = vmatpush1.msra.mxu0 0.0
    %524 = vmatprep.subr.mxu0 0.0
    %525 = vmatpush1.msra.mxu0 0.0
    %526 = vmatprep.subr.mxu0 0.0
    %527 = vmatpush1.msra.mxu0 0.0
    %528 = vmatprep.subr.mxu0 0.0
    %529 = vmatpush1.msra.mxu0 0.0
    %530 = vmatprep.subr.mxu0 0.0
    %531 = vmatpush1.msra.mxu0 0.0
    %532 = vmatprep.subr.mxu0 0.0
    %533 = vmatpush1.msra.mxu0 0.0
    %534 = vmatprep.subr.mxu0 0.0
    %535 = vmatpush1.msra.mxu0 0.0
    %536 = vmatprep.subr.mxu0 0.0
    %537 = vmatpush1.msra.mxu0 0.0
    %538 = vmatprep.subr.mxu0 0.0
    %539 = vmatpush1.msra.mxu0 0.0
    %540 = vmatprep.subr.mxu0 0.0
    %541 = vmatpush1.msra.mxu0 0.0
    %542 = vmatprep.subr.mxu0 0.0
    %543 = vmatpush1.msra.mxu0 0.0
    %544 = vmatprep.subr.mxu0 0.0
    %545 = vmatpush1.msra.mxu0 0.0
    %546 = vmatprep.subr.mxu0 0.0
    %547 = vmatpush1.msra.mxu0 0.0
    %548 = vmatprep.subr.mxu0 0.0
    %549 = vmatpush1.msra.mxu0 0.0
    %550 = vmatprep.subr.mxu0 0.0
    %551 = vmatpush1.msra.mxu0 0.0
    %552 = vmatprep.mubr.f32.mxu0 0.0
    %553 = vmatmul.mubr.f32.gmra.mrb[0].mxu0 %v486
    %v554 = vpop.f32.mrb[0].mxu0
    %v555 = vadd.f32 0.0, %v554
    %v556 = vpop.f32.mrb[0].mxu0
    %557 = vdwg.mxu0
    %v558 = vadd.f32 %v155, %v555
    %v559 = vxor.u32 %v558, 2147483648
    %v560 = vmul.f32 %v559, 1.442695
    %v561 = vpow.pop %v560
    %v562 = vadd.f32 %v561, 1.0
    %v563 = vrcp.pop %v562
    %v564 = vmul.f32 1.0, %v563
    %v565 = vtanh.pop %v558
    %v566 = vmul.f32 %v564, %v476
    %568 = vrot.lane.b32.xlu0 %v565, 32
    %v569 = vpop.permute.xlu0 %568
    %v571 = vmul.f32 %v564, %v569
    %573 = vrot.lane.b32.xlu0 %v571, 32
    %v574 = vpop.permute.xlu0 %573
    %v576 = vadd.f32 %v566, %v574
    %v577 = vtanh.pop %v576
    %579 = vrot.lane.b32.xlu0 %v577, 32
    %v580 = vpop.permute.xlu0 %579
    %v582 = vmul.f32 %v564, %v580
    %584 = vrot.lane.b32.xlu0 %v582, 64
    %v585 = vpop.permute.xlu0 %584
    %v586 = vsel %vm180, %v585, 0
    %588 = vmatprep.subr.mxu0 0.0
    %589 = vmatpush1.msra.mxu0 %v26
    %590 = vmatprep.subr.mxu0 0.0
    %591 = vmatpush1.msra.mxu0 %v27
    %592 = vmatprep.subr.mxu0 0.0
    %593 = vmatpush1.msra.mxu0 %v28
    %594 = vmatprep.subr.mxu0 0.0
    %595 = vmatpush1.msra.mxu0 %v29
    %596 = vmatprep.subr.mxu0 0.0
    %597 = vmatpush1.msra.mxu0 0.0
    %598 = vmatprep.subr.mxu0 0.0
    %599 = vmatpush1.msra.mxu0 0.0
    %600 = vmatprep.subr.mxu0 0.0
    %601 = vmatpush1.msra.mxu0 0.0
    %602 = vmatprep.subr.mxu0 0.0
    %603 = vmatpush1.msra.mxu0 0.0
    %604 = vmatprep.subr.mxu0 0.0
    %605 = vmatpush1.msra.mxu0 0.0
    %606 = vmatprep.subr.mxu0 0.0
    %607 = vmatpush1.msra.mxu0 0.0
    %608 = vmatprep.subr.mxu0 0.0
    %609 = vmatpush1.msra.mxu0 0.0
    %610 = vmatprep.subr.mxu0 0.0
    %611 = vmatpush1.msra.mxu0 0.0
    %612 = vmatprep.subr.mxu0 0.0
    %613 = vmatpush1.msra.mxu0 0.0
    %614 = vmatprep.subr.mxu0 0.0
    %615 = vmatpush1.msra.mxu0 0.0
    %616 = vmatprep.subr.mxu0 0.0
    %617 = vmatpush1.msra.mxu0 0.0
    %618 = vmatprep.subr.mxu0 0.0
    %619 = vmatpush1.msra.mxu0 0.0
    %620 = vmatprep.subr.mxu0 0.0
    %621 = vmatpush1.msra.mxu0 0.0
    %622 = vmatprep.subr.mxu0 0.0
    %623 = vmatpush1.msra.mxu0 0.0
    %624 = vmatprep.subr.mxu0 0.0
    %625 = vmatpush1.msra.mxu0 0.0
    %626 = vmatprep.subr.mxu0 0.0
    %627 = vmatpush1.msra.mxu0 0.0
    %628 = vmatprep.subr.mxu0 0.0
    %629 = vmatpush1.msra.mxu0 0.0
    %630 = vmatprep.subr.mxu0 0.0
    %631 = vmatpush1.msra.mxu0 0.0
    %632 = vmatprep.subr.mxu0 0.0
    %633 = vmatpush1.msra.mxu0 0.0
    %634 = vmatprep.subr.mxu0 0.0
    %635 = vmatpush1.msra.mxu0 0.0
    %636 = vmatprep.subr.mxu0 0.0
    %637 = vmatpush1.msra.mxu0 0.0
    %638 = vmatprep.subr.mxu0 0.0
    %639 = vmatpush1.msra.mxu0 0.0
    %640 = vmatprep.subr.mxu0 0.0
    %641 = vmatpush1.msra.mxu0 0.0
    %642 = vmatprep.subr.mxu0 0.0
    %643 = vmatpush1.msra.mxu0 0.0
    %644 = vmatprep.subr.mxu0 0.0
    %645 = vmatpush1.msra.mxu0 0.0
    %646 = vmatprep.subr.mxu0 0.0
    %647 = vmatpush1.msra.mxu0 0.0
    %648 = vmatprep.subr.mxu0 0.0
    %649 = vmatpush1.msra.mxu0 0.0
    %650 = vmatprep.subr.mxu0 0.0
    %651 = vmatpush1.msra.mxu0 0.0
    %652 = vmatprep.mubr.f32.mxu0 0.0
    %653 = vmatmul.mubr.f32.gmra.mrb[0].mxu0 %v586
    %v654 = vpop.f32.mrb[0].mxu0
    %v655 = vadd.f32 0.0, %v654
    %v656 = vpop.f32.mrb[0].mxu0
    %657 = vdwg.mxu0
    %v658 = vadd.f32 %v160, %v655
    %v659 = vxor.u32 %v658, 2147483648
    %v660 = vmul.f32 %v659, 1.442695
    %v661 = vpow.pop %v660
    %v662 = vadd.f32 %v661, 1.0
    %v663 = vrcp.pop %v662
    %v664 = vmul.f32 1.0, %v663
    %v665 = vtanh.pop %v658
    %v666 = vmul.f32 %v664, %v576
    %668 = vrot.lane.b32.xlu0 %v665, 32
    %v669 = vpop.permute.xlu0 %668
    %v671 = vmul.f32 %v664, %v669
    %673 = vrot.lane.b32.xlu0 %v671, 32
    %v674 = vpop.permute.xlu0 %673
    %v676 = vadd.f32 %v666, %v674
    %v677 = vtanh.pop %v676
    %679 = vrot.lane.b32.xlu0 %v677, 32
    %v680 = vpop.permute.xlu0 %679
    %v682 = vmul.f32 %v664, %v680
    %684 = vrot.lane.b32.xlu0 %v682, 64
    %v685 = vpop.permute.xlu0 %684
    %v686 = vsel %vm180, %v685, 0
    %688 = vmatprep.subr.mxu0 0.0
    %689 = vmatpush1.msra.mxu0 %v26
    %690 = vmatprep.subr.mxu0 0.0
    %691 = vmatpush1.msra.mxu0 %v27
    %692 = vmatprep.subr.mxu0 0.0
    %693 = vmatpush1.msra.mxu0 %v28
    %694 = vmatprep.subr.mxu0 0.0
    %695 = vmatpush1.msra.mxu0 %v29
    %696 = vmatprep.subr.mxu0 0.0
    %697 = vmatpush1.msra.mxu0 0.0
    %698 = vmatprep.subr.mxu0 0.0
    %699 = vmatpush1.msra.mxu0 0.0
    %700 = vmatprep.subr.mxu0 0.0
    %701 = vmatpush1.msra.mxu0 0.0
    %702 = vmatprep.subr.mxu0 0.0
    %703 = vmatpush1.msra.mxu0 0.0
    %704 = vmatprep.subr.mxu0 0.0
    %705 = vmatpush1.msra.mxu0 0.0
    %706 = vmatprep.subr.mxu0 0.0
    %707 = vmatpush1.msra.mxu0 0.0
    %708 = vmatprep.subr.mxu0 0.0
    %709 = vmatpush1.msra.mxu0 0.0
    %710 = vmatprep.subr.mxu0 0.0
    %711 = vmatpush1.msra.mxu0 0.0
    %712 = vmatprep.subr.mxu0 0.0
    %713 = vmatpush1.msra.mxu0 0.0
    %714 = vmatprep.subr.mxu0 0.0
    %715 = vmatpush1.msra.mxu0 0.0
    %716 = vmatprep.subr.mxu0 0.0
    %717 = vmatpush1.msra.mxu0 0.0
    %718 = vmatprep.subr.mxu0 0.0
    %719 = vmatpush1.msra.mxu0 0.0
    %720 = vmatprep.subr.mxu0 0.0
    %721 = vmatpush1.msra.mxu0 0.0
    %722 = vmatprep.subr.mxu0 0.0
    %723 = vmatpush1.msra.mxu0 0.0
    %724 = vmatprep.subr.mxu0 0.0
    %725 = vmatpush1.msra.mxu0 0.0
    %726 = vmatprep.subr.mxu0 0.0
    %727 = vmatpush1.msra.mxu0 0.0
    %728 = vmatprep.subr.mxu0 0.0
    %729 = vmatpush1.msra.mxu0 0.0
    %730 = vmatprep.subr.mxu0 0.0
    %731 = vmatpush1.msra.mxu0 0.0
    %732 = vmatprep.subr.mxu0 0.0
    %733 = vmatpush1.msra.mxu0 0.0
    %734 = vmatprep.subr.mxu0 0.0
    %735 = vmatpush1.msra.mxu0 0.0
    %736 = vmatprep.subr.mxu0 0.0
    %737 = vmatpush1.msra.mxu0 0.0
    %738 = vmatprep.subr.mxu0 0.0
    %739 = vmatpush1.msra.mxu0 0.0
    %740 = vmatprep.subr.mxu0 0.0
    %741 = vmatpush1.msra.mxu0 0.0
    %742 = vmatprep.subr.mxu0 0.0
    %743 = vmatpush1.msra.mxu0 0.0
    %744 = vmatprep.subr.mxu0 0.0
    %745 = vmatpush1.msra.mxu0 0.0
    %746 = vmatprep.subr.mxu0 0.0
    %747 = vmatpush1.msra.mxu0 0.0
    %748 = vmatprep.subr.mxu0 0.0
    %749 = vmatpush1.msra.mxu0 0.0
    %750 = vmatprep.subr.mxu0 0.0
    %751 = vmatpush1.msra.mxu0 0.0
    %752 = vmatprep.mubr.f32.mxu0 0.0
    %753 = vmatmul.mubr.f32.gmra.mrb[0].mxu0 %v686
    %v754 = vpop.f32.mrb[0].mxu0
    %v755 = vadd.f32 0.0, %v754
    %v756 = vpop.f32.mrb[0].mxu0
    %757 = vdwg.mxu0
    %v758 = vadd.f32 %v165, %v755
    %v759 = vxor.u32 %v758, 2147483648
    %v760 = vmul.f32 %v759, 1.442695
    %v761 = vpow.pop %v760
    %v762 = vadd.f32 %v761, 1.0
    %v763 = vrcp.pop %v762
    %v764 = vmul.f32 1.0, %v763
    %v765 = vtanh.pop %v758
    %v766 = vmul.f32 %v764, %v676
    %768 = vrot.lane.b32.xlu0 %v765, 32
    %v769 = vpop.permute.xlu0 %768
    %v771 = vmul.f32 %v764, %v769
    %773 = vrot.lane.b32.xlu0 %v771, 32
    %v774 = vpop.permute.xlu0 %773
    %v776 = vadd.f32 %v766, %v774
    %v777 = vtanh.pop %v776
    %779 = vrot.lane.b32.xlu0 %v777, 32
    %v780 = vpop.permute.xlu0 %779
    %v782 = vmul.f32 %v764, %v780
    %784 = vrot.lane.b32.xlu0 %v782, 64
    %v785 = vpop.permute.xlu0 %784
    %v786 = vsel %vm180, %v785, 0
    %788 = vmatprep.subr.mxu0 0.0
    %789 = vmatpush1.msra.mxu0 %v26
    %790 = vmatprep.subr.mxu0 0.0
    %791 = vmatpush1.msra.mxu0 %v27
    %792 = vmatprep.subr.mxu0 0.0
    %793 = vmatpush1.msra.mxu0 %v28
    %794 = vmatprep.subr.mxu0 0.0
    %795 = vmatpush1.msra.mxu0 %v29
    %796 = vmatprep.subr.mxu0 0.0
    %797 = vmatpush1.msra.mxu0 0.0
    %798 = vmatprep.subr.mxu0 0.0
    %799 = vmatpush1.msra.mxu0 0.0
    %800 = vmatprep.subr.mxu0 0.0
    %801 = vmatpush1.msra.mxu0 0.0
    %802 = vmatprep.subr.mxu0 0.0
    %803 = vmatpush1.msra.mxu0 0.0
    %804 = vmatprep.subr.mxu0 0.0
    %805 = vmatpush1.msra.mxu0 0.0
    %806 = vmatprep.subr.mxu0 0.0
    %807 = vmatpush1.msra.mxu0 0.0
    %808 = vmatprep.subr.mxu0 0.0
    %809 = vmatpush1.msra.mxu0 0.0
    %810 = vmatprep.subr.mxu0 0.0
    %811 = vmatpush1.msra.mxu0 0.0
    %812 = vmatprep.subr.mxu0 0.0
    %813 = vmatpush1.msra.mxu0 0.0
    %814 = vmatprep.subr.mxu0 0.0
    %815 = vmatpush1.msra.mxu0 0.0
    %816 = vmatprep.subr.mxu0 0.0
    %817 = vmatpush1.msra.mxu0 0.0
    %818 = vmatprep.subr.mxu0 0.0
    %819 = vmatpush1.msra.mxu0 0.0
    %820 = vmatprep.subr.mxu0 0.0
    %821 = vmatpush1.msra.mxu0 0.0
    %822 = vmatprep.subr.mxu0 0.0
    %823 = vmatpush1.msra.mxu0 0.0
    %824 = vmatprep.subr.mxu0 0.0
    %825 = vmatpush1.msra.mxu0 0.0
    %826 = vmatprep.subr.mxu0 0.0
    %827 = vmatpush1.msra.mxu0 0.0
    %828 = vmatprep.subr.mxu0 0.0
    %829 = vmatpush1.msra.mxu0 0.0
    %830 = vmatprep.subr.mxu0 0.0
    %831 = vmatpush1.msra.mxu0 0.0
    %832 = vmatprep.subr.mxu0 0.0
    %833 = vmatpush1.msra.mxu0 0.0
    %834 = vmatprep.subr.mxu0 0.0
    %835 = vmatpush1.msra.mxu0 0.0
    %836 = vmatprep.subr.mxu0 0.0
    %837 = vmatpush1.msra.mxu0 0.0
    %838 = vmatprep.subr.mxu0 0.0
    %839 = vmatpush1.msra.mxu0 0.0
    %840 = vmatprep.subr.mxu0 0.0
    %841 = vmatpush1.msra.mxu0 0.0
    %842 = vmatprep.subr.mxu0 0.0
    %843 = vmatpush1.msra.mxu0 0.0
    %844 = vmatprep.subr.mxu0 0.0
    %845 = vmatpush1.msra.mxu0 0.0
    %846 = vmatprep.subr.mxu0 0.0
    %847 = vmatpush1.msra.mxu0 0.0
    %848 = vmatprep.subr.mxu0 0.0
    %849 = vmatpush1.msra.mxu0 0.0
    %850 = vmatprep.subr.mxu0 0.0
    %851 = vmatpush1.msra.mxu0 0.0
    %852 = vmatprep.mubr.f32.mxu0 0.0
    %853 = vmatmul.mubr.f32.gmra.mrb[0].mxu0 %v786
    %v854 = vpop.f32.mrb[0].mxu0
    %v855 = vadd.f32 0.0, %v854
    %v856 = vpop.f32.mrb[0].mxu0
    %857 = vdwg.mxu0
    %v858 = vadd.f32 %v170, %v855
    %v859 = vxor.u32 %v858, 2147483648
    %v860 = vmul.f32 %v859, 1.442695
    %v861 = vpow.pop %v860
    %v862 = vadd.f32 %v861, 1.0
    %v863 = vrcp.pop %v862
    %v864 = vmul.f32 1.0, %v863
    %v865 = vtanh.pop %v858
    %v866 = vmul.f32 %v864, %v776
    %868 = vrot.lane.b32.xlu0 %v865, 32
    %v869 = vpop.permute.xlu0 %868
    %v871 = vmul.f32 %v864, %v869
    %873 = vrot.lane.b32.xlu0 %v871, 32
    %v874 = vpop.permute.xlu0 %873
    %v876 = vadd.f32 %v866, %v874
    %v877 = vtanh.pop %v876
    %879 = vrot.lane.b32.xlu0 %v877, 32
    %v880 = vpop.permute.xlu0 %879
    %v882 = vmul.f32 %v864, %v880
    %884 = vrot.lane.b32.xlu0 %v882, 64
    %v885 = vpop.permute.xlu0 %884
    %v886 = vsel %vm180, %v885, 0
    %888 = vmatprep.subr.mxu0 0.0
    %889 = vmatpush1.msra.mxu0 %v26
    %890 = vmatprep.subr.mxu0 0.0
    %891 = vmatpush1.msra.mxu0 %v27
    %892 = vmatprep.subr.mxu0 0.0
    %893 = vmatpush1.msra.mxu0 %v28
    %894 = vmatprep.subr.mxu0 0.0
    %895 = vmatpush1.msra.mxu0 %v29
    %896 = vmatprep.subr.mxu0 0.0
    %897 = vmatpush1.msra.mxu0 0.0
    %898 = vmatprep.subr.mxu0 0.0
    %899 = vmatpush1.msra.mxu0 0.0
    %900 = vmatprep.subr.mxu0 0.0
    %901 = vmatpush1.msra.mxu0 0.0
    %902 = vmatprep.subr.mxu0 0.0
    %903 = vmatpush1.msra.mxu0 0.0
    %904 = vmatprep.subr.mxu0 0.0
    %905 = vmatpush1.msra.mxu0 0.0
    %906 = vmatprep.subr.mxu0 0.0
    %907 = vmatpush1.msra.mxu0 0.0
    %908 = vmatprep.subr.mxu0 0.0
    %909 = vmatpush1.msra.mxu0 0.0
    %910 = vmatprep.subr.mxu0 0.0
    %911 = vmatpush1.msra.mxu0 0.0
    %912 = vmatprep.subr.mxu0 0.0
    %913 = vmatpush1.msra.mxu0 0.0
    %914 = vmatprep.subr.mxu0 0.0
    %915 = vmatpush1.msra.mxu0 0.0
    %916 = vmatprep.subr.mxu0 0.0
    %917 = vmatpush1.msra.mxu0 0.0
    %918 = vmatprep.subr.mxu0 0.0
    %919 = vmatpush1.msra.mxu0 0.0
    %920 = vmatprep.subr.mxu0 0.0
    %921 = vmatpush1.msra.mxu0 0.0
    %922 = vmatprep.subr.mxu0 0.0
    %923 = vmatpush1.msra.mxu0 0.0
    %924 = vmatprep.subr.mxu0 0.0
    %925 = vmatpush1.msra.mxu0 0.0
    %926 = vmatprep.subr.mxu0 0.0
    %927 = vmatpush1.msra.mxu0 0.0
    %928 = vmatprep.subr.mxu0 0.0
    %929 = vmatpush1.msra.mxu0 0.0
    %930 = vmatprep.subr.mxu0 0.0
    %931 = vmatpush1.msra.mxu0 0.0
    %932 = vmatprep.subr.mxu0 0.0
    %933 = vmatpush1.msra.mxu0 0.0
    %934 = vmatprep.subr.mxu0 0.0
    %935 = vmatpush1.msra.mxu0 0.0
    %936 = vmatprep.subr.mxu0 0.0
    %937 = vmatpush1.msra.mxu0 0.0
    %938 = vmatprep.subr.mxu0 0.0
    %939 = vmatpush1.msra.mxu0 0.0
    %940 = vmatprep.subr.mxu0 0.0
    %941 = vmatpush1.msra.mxu0 0.0
    %942 = vmatprep.subr.mxu0 0.0
    %943 = vmatpush1.msra.mxu0 0.0
    %944 = vmatprep.subr.mxu0 0.0
    %945 = vmatpush1.msra.mxu0 0.0
    %946 = vmatprep.subr.mxu0 0.0
    %947 = vmatpush1.msra.mxu0 0.0
    %948 = vmatprep.subr.mxu0 0.0
    %949 = vmatpush1.msra.mxu0 0.0
    %950 = vmatprep.subr.mxu0 0.0
    %951 = vmatpush1.msra.mxu0 0.0
    %952 = vmatprep.mubr.f32.mxu0 0.0
    %953 = vmatmul.mubr.f32.gmra.mrb[0].mxu0 %v886
    %v954 = vpop.f32.mrb[0].mxu0
    %v955 = vadd.f32 0.0, %v954
    %v956 = vpop.f32.mrb[0].mxu0
    %957 = vdwg.mxu0
    %v958 = vadd.f32 %v175, %v955
    %v959 = vxor.u32 %v958, 2147483648
    %v960 = vmul.f32 %v959, 1.442695
    %v961 = vpow.pop %v960
    %v962 = vadd.f32 %v961, 1.0
    %v963 = vrcp.pop %v962
    %v964 = vmul.f32 1.0, %v963
    %v965 = vtanh.pop %v958
    %v966 = vmul.f32 %v964, %v876
    %968 = vrot.lane.b32.xlu0 %v965, 32
    %v969 = vpop.permute.xlu0 %968
    %v971 = vmul.f32 %v964, %v969
    %973 = vrot.lane.b32.xlu0 %v971, 32
    %v974 = vpop.permute.xlu0 %973
    %v976 = vadd.f32 %v966, %v974
    %v977 = vtanh.pop %v976
    %979 = vrot.lane.b32.xlu0 %v977, 32
    %v980 = vpop.permute.xlu0 %979
    %v982 = vmul.f32 %v964, %v980
    %984 = vrot.lane.b32.xlu0 %v976, 32
    %v985 = vpop.permute.xlu0 %984
    %987 = vrot.lane.b32.xlu0 %v982, 64
    %v988 = vpop.permute.xlu0 %987
    %989 = vrot.lane.b32.xlu0 %v985, 64
    %v990 = vpop.permute.xlu0 %989
    %993 = vst.msk [vmem:[#allocation2] sm:$0xff] %vm180, %v988
    %994 = vst.msk [vmem:[#allocation2 + $0x8] sm:$0xff] %vm180, %v990
    %v995 = vld [vmem:[%s4] sm:$0xff]
    %v996 = vld [vmem:[%s4 + $0x8] sm:$0xff]
    %v997 = vld [vmem:[%s4 + $0x10] sm:$0xff]
    %v998 = vld [vmem:[%s4 + $0x18] sm:$0xff]
    %v999 = vlaneseq
    %v1000 = vshrl.u32 %v999, 7
    %v1001 = vsub.s32 0, %v1000
    %v1002 = vrot.slane %v31, %v1001
    %v1003 = vsel %vm180, %v988, 0
    %1005 = vmatprep.subr.mxu0 0.0
    %1006 = vmatpush1.msra.mxu0 %v995
    %1007 = vmatprep.subr.mxu0 0.0
    %1008 = vmatpush1.msra.mxu0 %v996
    %1009 = vmatprep.subr.mxu0 0.0
    %1010 = vmatpush1.msra.mxu0 %v997
    %1011 = vmatprep.subr.mxu0 0.0
    %1012 = vmatpush1.msra.mxu0 %v998
    %1013 = vmatprep.subr.mxu0 0.0
    %1014 = vmatpush1.msra.mxu0 0.0
    %1015 = vmatprep.subr.mxu0 0.0
    %1016 = vmatpush1.msra.mxu0 0.0
    %1017 = vmatprep.subr.mxu0 0.0
    %1018 = vmatpush1.msra.mxu0 0.0
    %1019 = vmatprep.subr.mxu0 0.0
    %1020 = vmatpush1.msra.mxu0 0.0
    %1021 = vmatprep.subr.mxu0 0.0
    %1022 = vmatpush1.msra.mxu0 0.0
    %1023 = vmatprep.subr.mxu0 0.0
    %1024 = vmatpush1.msra.mxu0 0.0
    %1025 = vmatprep.subr.mxu0 0.0
    %1026 = vmatpush1.msra.mxu0 0.0
    %1027 = vmatprep.subr.mxu0 0.0
    %1028 = vmatpush1.msra.mxu0 0.0
    %1029 = vmatprep.subr.mxu0 0.0
    %1030 = vmatpush1.msra.mxu0 0.0
    %1031 = vmatprep.subr.mxu0 0.0
    %1032 = vmatpush1.msra.mxu0 0.0
    %1033 = vmatprep.subr.mxu0 0.0
    %1034 = vmatpush1.msra.mxu0 0.0
    %1035 = vmatprep.subr.mxu0 0.0
    %1036 = vmatpush1.msra.mxu0 0.0
    %1037 = vmatprep.subr.mxu0 0.0
    %1038 = vmatpush1.msra.mxu0 0.0
    %1039 = vmatprep.subr.mxu0 0.0
    %1040 = vmatpush1.msra.mxu0 0.0
    %1041 = vmatprep.subr.mxu0 0.0
    %1042 = vmatpush1.msra.mxu0 0.0
    %1043 = vmatprep.subr.mxu0 0.0
    %1044 = vmatpush1.msra.mxu0 0.0
    %1045 = vmatprep.subr.mxu0 0.0
    %1046 = vmatpush1.msra.mxu0 0.0
    %1047 = vmatprep.subr.mxu0 0.0
    %1048 = vmatpush1.msra.mxu0 0.0
    %1049 = vmatprep.subr.mxu0 0.0
    %1050 = vmatpush1.msra.mxu0 0.0
    %1051 = vmatprep.subr.mxu0 0.0
    %1052 = vmatpush1.msra.mxu0 0.0
    %1053 = vmatprep.subr.mxu0 0.0
    %1054 = vmatpush1.msra.mxu0 0.0
    %1055 = vmatprep.subr.mxu0 0.0
    %1056 = vmatpush1.msra.mxu0 0.0
    %1057 = vmatprep.subr.mxu0 0.0
    %1058 = vmatpush1.msra.mxu0 0.0
    %1059 = vmatprep.subr.mxu0 0.0
    %1060 = vmatpush1.msra.mxu0 0.0
    %1061 = vmatprep.subr.mxu0 0.0
    %1062 = vmatpush1.msra.mxu0 0.0
    %1063 = vmatprep.subr.mxu0 0.0
    %1064 = vmatpush1.msra.mxu0 0.0
    %1065 = vmatprep.subr.mxu0 0.0
    %1066 = vmatpush1.msra.mxu0 0.0
    %1067 = vmatprep.subr.mxu0 0.0
    %1068 = vmatpush1.msra.mxu0 0.0
    %1069 = vmatprep.mubr.f32.mxu0 0.0
    %1070 = vmatmul.mubr.f32.gmra.mrb[0].mxu0 %v286
    %v1071 = vpop.f32.mrb[0].mxu0
    %v1072 = vadd.f32 %v1002, %v1071
    %v1073 = vpop.f32.mrb[0].mxu0
    %1074 = vmatprep.mubr.f32.mxu0 0.0
    %1075 = vmatmul.mubr.f32.gmra.mrb[0].mxu0 %v386
    %v1076 = vpop.f32.mrb[0].mxu0
    %v1077 = vadd.f32 %v1002, %v1076
    %v1078 = vpop.f32.mrb[0].mxu0
    %1079 = vmatprep.mubr.f32.mxu0 0.0
    %1080 = vmatmul.mubr.f32.gmra.mrb[0].mxu0 %v486
    %v1081 = vpop.f32.mrb[0].mxu0
    %v1082 = vadd.f32 %v1002, %v1081
    %v1083 = vpop.f32.mrb[0].mxu0
    %1084 = vmatprep.mubr.f32.mxu0 0.0
    %1085 = vmatmul.mubr.f32.gmra.mrb[0].mxu0 %v586
    %v1086 = vpop.f32.mrb[0].mxu0
    %v1087 = vadd.f32 %v1002, %v1086
    %v1088 = vpop.f32.mrb[0].mxu0
    %1089 = vmatprep.mubr.f32.mxu0 0.0
    %1090 = vmatmul.mubr.f32.gmra.mrb[0].mxu0 %v686
    %v1091 = vpop.f32.mrb[0].mxu0
    %v1092 = vadd.f32 %v1002, %v1091
    %v1093 = vpop.f32.mrb[0].mxu0
    %1094 = vmatprep.mubr.f32.mxu0 0.0
    %1095 = vmatmul.mubr.f32.gmra.mrb[0].mxu0 %v786
    %v1096 = vpop.f32.mrb[0].mxu0
    %v1097 = vadd.f32 %v1002, %v1096
    %v1098 = vpop.f32.mrb[0].mxu0
    %1099 = vmatprep.mubr.f32.mxu0 0.0
    %1100 = vmatmul.mubr.f32.gmra.mrb[0].mxu0 %v886
    %v1101 = vpop.f32.mrb[0].mxu0
    %v1102 = vadd.f32 %v1002, %v1101
    %v1103 = vpop.f32.mrb[0].mxu0
    %1104 = vmatprep.mubr.f32.mxu0 0.0
    %1105 = vmatmul.mubr.f32.gmra.mrb[0].mxu0 %v1003
    %v1106 = vpop.f32.mrb[0].mxu0
    %v1107 = vadd.f32 %v1002, %v1106
    %v1108 = vpop.f32.mrb[0].mxu0
    %1109 = vdwg.mxu0
    %vm1110 = vcmask 80896
    %v1111 = vsel %vm1110, %v1072, 0.0
    %1112 = vadd.xlane.f32.xlu0 %v1111
    %v1113 = vpop.xlane.xlu0 %1112
    %v1114 = vsel %vm1110, %v1077, 0.0
    %1115 = vadd.xlane.f32.xlu0 %v1114
    %v1116 = vpop.xlane.xlu0 %1115
    %v1117 = vsel %vm1110, %v1082, 0.0
    %1118 = vadd.xlane.f32.xlu0 %v1117
    %v1119 = vpop.xlane.xlu0 %1118
    %v1120 = vsel %vm1110, %v1087, 0.0
    %1121 = vadd.xlane.f32.xlu0 %v1120
    %v1122 = vpop.xlane.xlu0 %1121
    %v1123 = vsel %vm1110, %v1092, 0.0
    %1124 = vadd.xlane.f32.xlu0 %v1123
    %v1125 = vpop.xlane.xlu0 %1124
    %v1126 = vsel %vm1110, %v1097, 0.0
    %1127 = vadd.xlane.f32.xlu0 %v1126
    %v1128 = vpop.xlane.xlu0 %1127
    %v1129 = vsel %vm1110, %v1102, 0.0
    %1130 = vadd.xlane.f32.xlu0 %v1129
    %v1131 = vpop.xlane.xlu0 %1130
    %v1132 = vsel %vm1110, %v1107, 0.0
    %1133 = vadd.xlane.f32.xlu0 %v1132
    %v1134 = vpop.xlane.xlu0 %1133
    %v1135 = vrcp.pop 10.0
    %v1136 = vmul.f32 %v1113, %v1135
    %v1137 = vmul.f32 %v1116, %v1135
    %v1138 = vmul.f32 %v1119, %v1135
    %v1139 = vmul.f32 %v1122, %v1135
    %v1140 = vmul.f32 %v1125, %v1135
    %v1141 = vmul.f32 %v1128, %v1135
    %v1142 = vmul.f32 %v1131, %v1135
    %v1143 = vmul.f32 %v1134, %v1135
    %v1144 = vsub.f32 %v1072, %v1136
    %v1145 = vsub.f32 %v1077, %v1137
    %v1146 = vsub.f32 %v1082, %v1138
    %v1147 = vsub.f32 %v1087, %v1139
    %v1148 = vsub.f32 %v1092, %v1140
    %v1149 = vsub.f32 %v1097, %v1141
    %v1150 = vsub.f32 %v1102, %v1142
    %v1151 = vsub.f32 %v1107, %v1143
    %v1152 = vmul.f32 %v1144, %v1144
    %v1153 = vmul.f32 %v1145, %v1145
    %v1154 = vmul.f32 %v1146, %v1146
    %v1155 = vmul.f32 %v1147, %v1147
    %v1156 = vmul.f32 %v1148, %v1148
    %v1157 = vmul.f32 %v1149, %v1149
    %v1158 = vmul.f32 %v1150, %v1150
    %v1159 = vmul.f32 %v1151, %v1151
    %v1160 = vsel %vm1110, %v1152, 0.0
    %1161 = vadd.xlane.f32.xlu0 %v1160
    %v1162 = vpop.xlane.xlu0 %1161
    %v1163 = vsel %vm1110, %v1153, 0.0
    %1164 = vadd.xlane.f32.xlu0 %v1163
    %v1165 = vpop.xlane.xlu0 %1164
    %v1166 = vsel %vm1110, %v1154, 0.0
    %1167 = vadd.xlane.f32.xlu0 %v1166
    %v1168 = vpop.xlane.xlu0 %1167
    %v1169 = vsel %vm1110, %v1155, 0.0
    %1170 = vadd.xlane.f32.xlu0 %v1169
    %v1171 = vpop.xlane.xlu0 %1170
    %v1172 = vsel %vm1110, %v1156, 0.0
    %1173 = vadd.xlane.f32.xlu0 %v1172
    %v1174 = vpop.xlane.xlu0 %1173
    %v1175 = vsel %vm1110, %v1157, 0.0
    %1176 = vadd.xlane.f32.xlu0 %v1175
    %v1177 = vpop.xlane.xlu0 %1176
    %v1178 = vsel %vm1110, %v1158, 0.0
    %1179 = vadd.xlane.f32.xlu0 %v1178
    %v1180 = vpop.xlane.xlu0 %1179
    %v1181 = vsel %vm1110, %v1159, 0.0
    %1182 = vadd.xlane.f32.xlu0 %v1181
    %v1183 = vpop.xlane.xlu0 %1182
    %v1184 = vmul.f32 %v1162, %v1135
    %v1185 = vmul.f32 %v1165, %v1135
    %v1186 = vmul.f32 %v1168, %v1135
    %v1187 = vmul.f32 %v1171, %v1135
    %v1188 = vmul.f32 %v1174, %v1135
    %v1189 = vmul.f32 %v1177, %v1135
    %v1190 = vmul.f32 %v1180, %v1135
    %v1191 = vmul.f32 %v1183, %v1135
    %v1192 = vadd.f32 %v1184, 1e-05
    %v1193 = vadd.f32 %v1185, 1e-05
    %v1194 = vadd.f32 %v1186, 1e-05
    %v1195 = vadd.f32 %v1187, 1e-05
    %v1196 = vadd.f32 %v1188, 1e-05
    %v1197 = vadd.f32 %v1189, 1e-05
    %v1198 = vadd.f32 %v1190, 1e-05
    %v1199 = vadd.f32 %v1191, 1e-05
    %v1200 = vrsqrt.pop %v1192
    %v1201 = vrsqrt.pop %v1193
    %v1202 = vrsqrt.pop %v1194
    %v1203 = vrsqrt.pop %v1195
    %v1204 = vrsqrt.pop %v1196
    %v1205 = vrsqrt.pop %v1197
    %v1206 = vrsqrt.pop %v1198
    %v1207 = vrsqrt.pop %v1199
    %v1208 = vmul.f32 %v1144, %v1200
    %v1209 = vmul.f32 %v1145, %v1201
    %v1210 = vmul.f32 %v1146, %v1202
    %v1211 = vmul.f32 %v1147, %v1203
    %v1212 = vmul.f32 %v1148, %v1204
    %v1213 = vmul.f32 %v1149, %v1205
    %v1214 = vmul.f32 %v1150, %v1206
    %v1215 = vmul.f32 %v1151, %v1207
    %v1216 = vlaneseq
    %v1217 = vshrl.u32 %v1216, 7
    %v1218 = vsub.s32 0, %v1217
    %v1219 = vrot.slane %v32, %v1218
    %v1220 = vmul.f32 %v1208, %v1219
    %v1221 = vmul.f32 %v1209, %v1219
    %v1222 = vmul.f32 %v1210, %v1219
    %v1223 = vmul.f32 %v1211, %v1219
    %v1224 = vmul.f32 %v1212, %v1219
    %v1225 = vmul.f32 %v1213, %v1219
    %v1226 = vmul.f32 %v1214, %v1219
    %v1227 = vmul.f32 %v1215, %v1219
    %v1228 = vlaneseq
    %v1229 = vshrl.u32 %v1228, 7
    %v1230 = vsub.s32 0, %v1229
    %v1231 = vrot.slane %v33, %v1230
    %v1232 = vadd.f32 %v1220, %v1231
    %v1233 = vadd.f32 %v1221, %v1231
    %v1234 = vadd.f32 %v1222, %v1231
    %v1235 = vadd.f32 %v1223, %v1231
    %v1236 = vadd.f32 %v1224, %v1231
    %v1237 = vadd.f32 %v1225, %v1231
    %v1238 = vadd.f32 %v1226, %v1231
    %v1239 = vadd.f32 %v1227, %v1231
    %v1240 = vtanh.pop %v1232
    %v1241 = vtanh.pop %v1233
    %v1242 = vtanh.pop %v1234
    %v1243 = vtanh.pop %v1235
    %v1244 = vtanh.pop %v1236
    %v1245 = vtanh.pop %v1237
    %v1246 = vtanh.pop %v1238
    %v1247 = vtanh.pop %v1239
    %1248 = vst.msk [vmem:[%s6] sm:$0xff] %vm1110, %v1240
    %1249 = vst.msk [vmem:[%s6 + $0x8] sm:$0xff] %vm1110, %v1241
    %1250 = vst.msk [vmem:[%s6 + $0x10] sm:$0xff] %vm1110, %v1242
    %1251 = vst.msk [vmem:[%s6 + $0x18] sm:$0xff] %vm1110, %v1243
    %1252 = vst.msk [vmem:[%s6 + $0x20] sm:$0xff] %vm1110, %v1244
    %1253 = vst.msk [vmem:[%s6 + $0x28] sm:$0xff] %vm1110, %v1245
    %1254 = vst.msk [vmem:[%s6 + $0x30] sm:$0xff] %vm1110, %v1246
    %1255 = vst.msk [vmem:[%s6 + $0x38] sm:$0xff] %vm1110, %v1247
    // Predicated region
    $region26: #{tpu_custom_call.1} parent=1 // pred_check
      _
    $region27: #{tpu_custom_call.1} parent=1 // pred_check_branch
      %1257 = sbr.rel (0) target = $region29
    $region28: #{tpu_custom_call.1} parent=1 // pred_region
      _
    $region29: #{tpu_custom_call.1} parent=1 // pred_fallthru
      _
    // Predicated region
    $region30: #{tpu_custom_call.1} parent=1 // pred_check
      _
    $region31: #{tpu_custom_call.1} parent=1 // pred_check_branch
      %1259 = sbr.rel (0) target = $region33
    $region32: #{tpu_custom_call.1} parent=1 // pred_region
      %s1261 = ssub.s32 256, 256
      %1262 = vsyncadd [#allocation3], %s1261
      %s1263 = sshll.u32 [#allocation2], 4
      %s1264 = int_to_ptr.vmem [resolvable:$true] %s1263
      %1269 = dma.vmem_to_hbm [thread:$0]  %s1264, 256, %s7, [#allocation3], 128, 128, 8
    $region33: #{tpu_custom_call.1} parent=1 // pred_fallthru
      _
    // Predicated region
    $region34: #{tpu_custom_call.1} parent=1 // pred_check
      _
    $region35: #{tpu_custom_call.1} parent=1 // pred_check_branch
      %1271 = sbr.rel (0) target = $region37
    $region36: #{tpu_custom_call.1} parent=1 // pred_region
      _
    $region37: #{tpu_custom_call.1} parent=1 // pred_fallthru
      _
    // Predicated region
    $region38: #{tpu_custom_call.1} parent=1 // pred_check
      _
    $region39: #{tpu_custom_call.1} parent=1 // pred_check_branch
      %1273 = sbr.rel (0) target = $region41
    $region40: #{tpu_custom_call.1} parent=1 // pred_region
      %1274 = dma.done [#allocation3], 256
    $region41: #{tpu_custom_call.1} parent=1 // pred_fallthru
      _
    %1275 = vsyncpa [#allocation3], 1

</llo_original>
